<compile_context>
chip_gen: v5e
topology: v5e:2x2
jax: 0.10.0
libtpu: 0.0.40
codegen_flags: <defaults>
</compile_context>

<pallas_src>
import functools

import jax
import jax.numpy as jnp
from jax.experimental import pallas as pl
from jax.experimental.pallas import tpu as pltpu


K_PAD = 160      # conv-GEMM contraction dim: 147 (rgb) / 49 (depth) -> 160 (16-multiple)
COUT_PAD = 128   # stem Cout padded 96 -> 128 (lane-dense MXU outputs / stores)
FEAT = 384       # encoder output width used by the heads


# ----------------------------------------------------------------------------
# Small helpers
# ----------------------------------------------------------------------------
def _round_up(x, m):
    return ((x + m - 1) // m) * m


def _sigmoid(x):
    # Exact sigmoid: exp goes to the EUP, the divide is cheap and bit-closer
    # to torch.sigmoid than an approximate reciprocal.
    return 1.0 / (1.0 + jnp.exp(-x))


def _full_spec(shape):
    n = len(shape)
    return pl.BlockSpec(shape, lambda *_: (0,) * n)


def _pick_spatial_tile(s_total, cap=2048):
    """Largest 16-multiple tile <= cap that minimizes zero-padding of S.

    Zero patch rows are exact through the bias-free conv / projection / ReLU
    (they contribute nothing to the GAP sum; the mean uses 1/true_S), so S is
    simply padded up to a tile multiple.  Large tiles amortize the ~0.35us
    per-grid-step overhead while the per-step working set stays well under the
    scoped-VMEM default on v5e/v6e/v7x.
    """
    s16 = _round_up(s_total, 16)
    if s16 <= cap:
        return s16
    best_t, best_pad = cap, _round_up(s_total, cap) - s_total
    for t in range(cap, 255, -16):
        pad = _round_up(s_total, t) - s_total
        if pad < best_pad:
            best_t, best_pad = t, pad
        if pad == 0:
            break
    return best_t


# ----------------------------------------------------------------------------
# Kernel 1: fused (both streams) stem-conv GEMM + projection + GAP + sigmoid
# ----------------------------------------------------------------------------
def _stem_kernel(p_ref, wconv_ref, wproj_ref, gap_ref, acc_ref, *, inv_s):
    s = pl.program_id(2)

    @pl.when(s == 0)
    def _():
        acc_ref[...] = jnp.zeros_like(acc_ref)

    patches = p_ref[0, 0]                                    # (TS, K_PAD) bf16
    # conv0 (7x7 / stride-2 / pad-3, bias-free) as GEMM; Cout zero-padded 96->128.
    feat = jnp.dot(patches, wconv_ref[0],
                   preferred_element_type=jnp.float32)       # (TS, 128) f32
    # Synthetic stand-in for the DenseNet blocks: 128(->96 real)->384 + ReLU.
    proj = jnp.maximum(
        jnp.dot(feat.astype(jnp.bfloat16), wproj_ref[0],
                preferred_element_type=jnp.float32), 0.0)    # (TS, 384) f32
    acc_ref[...] += jnp.sum(proj, axis=0, keepdims=True)     # (1, 384)

    @pl.when(s == pl.num_programs(2) - 1)
    def _():
        gap = _sigmoid(acc_ref[...] * inv_s)                  # GAP mean + sigmoid
        gap_ref[...] = jnp.broadcast_to(gap.reshape(1, 1, 1, FEAT), gap_ref.shape)


def _stem_streams(patches, w_conv, w_proj, *, true_s, ts):
    """patches: (2, B, S_pad, K_PAD) bf16 -> sigmoid(GAP(relu(proj(conv(.))))) : (2, B, 384)."""
    n_st, B, s_pad, kp = patches.shape
    n_s = s_pad // ts

    gap8 = pl.pallas_call(
        functools.partial(_stem_kernel, inv_s=1.0 / float(true_s)),
        out_shape=jax.ShapeDtypeStruct((n_st, B, 8, FEAT), jnp.float32),
        grid_spec=pltpu.PrefetchScalarGridSpec(
            num_scalar_prefetch=0,
            grid=(n_st, B, n_s),
            in_specs=[
                pl.BlockSpec((1, 1, ts, kp), lambda st, b, s: (st, b, s, 0)),    # streamed
                pl.BlockSpec((1, kp, COUT_PAD), lambda st, b, s: (st, 0, 0)),    # resident
                pl.BlockSpec((1, COUT_PAD, FEAT), lambda st, b, s: (st, 0, 0)),  # resident
            ],
            out_specs=pl.BlockSpec((1, 1, 8, FEAT), lambda st, b, s: (st, b, 0, 0)),
            scratch_shapes=[pltpu.VMEM((1, FEAT), jnp.float32)],
        ),
        compiler_params=pltpu.CompilerParams(
            dimension_semantics=("parallel", "parallel", "arbitrary")),
    )(patches, w_conv, w_proj)
    return gap8[:, :, 0, :]                                   # (2, B, 384)


# ----------------------------------------------------------------------------
# Kernel 2: multi-head classifier (packed head GEMMs, split over gap halves)
# ----------------------------------------------------------------------------
def _head_kernel(gr_ref, gd_ref, w1r_ref, w1d_ref, b1_ref, w2_ref, b2_ref,
                 gap_ref, heads_ref):
    gr = gr_ref[...]                               # (B, 384) sigmoid(gap_rgb)
    gd = gd_ref[...]                               # (B, 384) sigmoid(gap_d)

    # gap = cat([gap_rgb, gap_d], dim=1): written as two lane-dense slices
    # (no in-kernel concat / relayout).
    gap_ref[:, 0:FEAT] = gr
    gap_ref[:, FEAT:2 * FEAT] = gd

    # Packed GEMM #1 split over the two halves of the concatenated gap:
    # cols [0:384]=dense[0], [384]=linear, [385]=linear_rgb, [386]=linear_d.
    y1 = (jnp.dot(gr.astype(jnp.bfloat16), w1r_ref[...],
                  preferred_element_type=jnp.float32)
          + jnp.dot(gd.astype(jnp.bfloat16), w1d_ref[...],
                    preferred_element_type=jnp.float32)
          + b1_ref[...])                           # (B, 512)
    h = jnp.maximum(y1[:, 0:FEAT], 0.0)
    op = y1[:, FEAT:FEAT + 1]                      # NOTE: no sigmoid on op (matches PyTorch)
    op_rgb = _sigmoid(y1[:, FEAT + 1:FEAT + 2])
    op_d = _sigmoid(y1[:, FEAT + 2:FEAT + 3])

    # Packed GEMM #2: col 0 = dense[2], rest zero.
    y2 = jnp.dot(h.astype(jnp.bfloat16), w2_ref[...],
                 preferred_element_type=jnp.float32) + b2_ref[...]   # (B, 128)
    op_adv = _sigmoid(y2[:, 0:1])

    # Lane-packed output: col0=op, col1=op_rgb, col2=op_d, col3=op_adv.
    lane = jax.lax.broadcasted_iota(jnp.int32, heads_ref.shape, 1)
    heads_ref[...] = (jnp.where(lane == 0, op, 0.0) +
                      jnp.where(lane == 1, op_rgb, 0.0) +
                      jnp.where(lane == 2, op_d, 0.0) +
                      jnp.where(lane == 3, op_adv, 0.0))


def head_call(gap_rgb, gap_d, p):
    B = gap_rgb.shape[0]
    out_shapes = (
        jax.ShapeDtypeStruct((B, 2 * FEAT), jnp.float32),   # gap (concatenated)
        jax.ShapeDtypeStruct((B, 128), jnp.float32),        # packed [op|op_rgb|op_d|op_adv|0..]
    )
    args = (gap_rgb, gap_d, p["w_head1_rgb"], p["w_head1_d"], p["b_head1"],
            p["w_head2"], p["b_head2"])
    return pl.pallas_call(
        _head_kernel,
        out_shape=out_shapes,
        grid=(1,),
        in_specs=[_full_spec(a.shape) for a in args],
        out_specs=tuple(_full_spec(s.shape) for s in out_shapes),
    )(*args)


# ----------------------------------------------------------------------------
# Plain-JAX glue: im2col for the 7x7 / stride-2 / pad-3 stem conv (bf16)
# ----------------------------------------------------------------------------
def _im2col(x_nhwc, k=7, stride=2, pad=3):
    B, H, W, C = x_nhwc.shape
    xp = jnp.pad(x_nhwc, ((0, 0), (pad, pad), (pad, pad), (0, 0)))
    OH = (H + 2 * pad - k) // stride + 1
    OW = (W + 2 * pad - k) // stride + 1
    cols = []
    for kh in range(k):
        for kw in range(k):
            cols.append(xp[:, kh:kh + stride * OH:stride,
                           kw:kw + stride * OW:stride, :])
    patches = jnp.stack(cols, axis=3)                      # (B, OH, OW, k*k, C)
    return patches.reshape(B, OH * OW, k * k * C)


# ----------------------------------------------------------------------------
# Parameters (deterministic synthetic init; shapes follow the module __init__)
# ----------------------------------------------------------------------------
def init_params(key):
    ks = jax.random.split(key, 12)
    s = 0.05
    w_conv_rgb = jax.random.normal(ks[0], (96, 3, 7, 7), jnp.float32) * s
    # Depth stem weight = channel-mean of the RGB stem weight, as in __init__.
    w_conv_d = jnp.mean(w_conv_rgb, axis=1, keepdims=True)              # (96,1,7,7)

    wp_rgb = jax.random.normal(ks[1], (96, FEAT), jnp.float32) * s      # stand-in proj
    wp_d = jax.random.normal(ks[2], (96, FEAT), jnp.float32) * s

    w_lr = jax.random.normal(ks[3], (1, FEAT), jnp.float32) * s         # linear_rgb
    b_lr = jax.random.normal(ks[4], (1,), jnp.float32) * s
    w_ld = jax.random.normal(ks[5], (1, FEAT), jnp.float32) * s         # linear_d
    b_ld = jax.random.normal(ks[6], (1,), jnp.float32) * s
    w_l = jax.random.normal(ks[7], (1, 2 * FEAT), jnp.float32) * s      # linear
    b_l = jax.random.normal(ks[8], (1,), jnp.float32) * s
    w_d1 = jax.random.normal(ks[9], (FEAT, 2 * FEAT), jnp.float32) * s  # dense[0]
    b_d1 = jax.random.normal(ks[10], (FEAT,), jnp.float32) * s
    w_d2 = jax.random.normal(ks[11], (1, FEAT), jnp.float32) * s        # dense[2]
    b_d2 = jnp.zeros((1,), jnp.float32)

    def conv_to_gemm(w):
        # (Cout, Cin, KH, KW) -> (K_PAD, 128) bf16; padded rows/cols are exactly
        # zero so results are unchanged.  K padded to a 16-multiple (bf16
        # sublane packing) and shared by both streams for the merged layout.
        Cout, Cin, KH, KW = w.shape
        g = jnp.transpose(w, (2, 3, 1, 0)).reshape(KH * KW * Cin, Cout)
        g = jnp.pad(g, ((0, K_PAD - KH * KW * Cin), (0, COUT_PAD - Cout)))
        return g.astype(jnp.bfloat16)

    def proj_pad(wp):
        # (96, 384) -> (128, 384) bf16; padded rows are zero so results match.
        return jnp.pad(wp, ((0, COUT_PAD - wp.shape[0]), (0, 0))).astype(jnp.bfloat16)

    w_conv = jnp.stack([conv_to_gemm(w_conv_rgb), conv_to_gemm(w_conv_d)], axis=0)
    w_proj = jnp.stack([proj_pad(wp_rgb), proj_pad(wp_d)], axis=0)

    # Packed head GEMM #1 split into gap_rgb / gap_d halves: (384, 512) each.
    w1r = jnp.zeros((FEAT, 512), jnp.float32)
    w1d = jnp.zeros((FEAT, 512), jnp.float32)
    w1r = w1r.at[:, 0:FEAT].set(w_d1[:, 0:FEAT].T)          # dense[0], rgb half
    w1d = w1d.at[:, 0:FEAT].set(w_d1[:, FEAT:2 * FEAT].T)   # dense[0], depth half
    w1r = w1r.at[:, FEAT].set(w_l[0, 0:FEAT])               # linear, rgb half
    w1d = w1d.at[:, FEAT].set(w_l[0, FEAT:2 * FEAT])        # linear, depth half
    w1r = w1r.at[:, FEAT + 1].set(w_lr[0])                  # linear_rgb
    w1d = w1d.at[:, FEAT + 2].set(w_ld[0])                  # linear_d
    b1 = jnp.zeros((1, 512), jnp.float32)
    b1 = b1.at[0, 0:FEAT].set(b_d1)
    b1 = b1.at[0, FEAT].set(b_l[0])
    b1 = b1.at[0, FEAT + 1].set(b_lr[0])
    b1 = b1.at[0, FEAT + 2].set(b_ld[0])

    # Packed head GEMM #2: (384, 128), col 0 = dense[2].
    w2 = jnp.zeros((FEAT, 128), jnp.float32).at[:, 0].set(w_d2[0])
    b2 = jnp.zeros((1, 128), jnp.float32).at[0, 0].set(b_d2[0])

    return {
        "w_conv": w_conv,                            # (2, 160, 128) bf16
        "w_proj": w_proj,                            # (2, 128, 384) bf16
        "w_head1_rgb": w1r.astype(jnp.bfloat16),     # (384, 512) bf16
        "w_head1_d": w1d.astype(jnp.bfloat16),       # (384, 512) bf16
        "b_head1": b1,                               # (1, 512)   f32
        "w_head2": w2.astype(jnp.bfloat16),          # (384, 128) bf16
        "b_head2": b2,                               # (1, 128)   f32
    }


# ----------------------------------------------------------------------------
# Forward pass (mirrors RGBDMH.forward)
# ----------------------------------------------------------------------------
@jax.jit
def rgbdmh_forward(img_nchw, params):
    """img_nchw: (B, 4, H, W) float32.  Returns (gap, op, op_rgb, op_d, op_adv)."""
    # NHWC + bf16 BEFORE im2col so the materialized patch tensor in HBM is bf16.
    x_rgb = jnp.transpose(img_nchw[:, 0:3, :, :], (0, 2, 3, 1)).astype(jnp.bfloat16)
    x_d = jnp.transpose(img_nchw[:, 3:4, :, :], (0, 2, 3, 1)).astype(jnp.bfloat16)

    p_rgb = _im2col(x_rgb)                                  # (B, S, 147) bf16
    p_d = _im2col(x_d)                                      # (B, S, 49)  bf16

    B, S, k_rgb = p_rgb.shape
    k_d = p_d.shape[-1]
    ts = _pick_spatial_tile(S)
    s_pad = _round_up(S, ts)
    p_rgb = jnp.pad(p_rgb, ((0, 0), (0, s_pad - S), (0, K_PAD - k_rgb)))
    p_d = jnp.pad(p_d, ((0, 0), (0, s_pad - S), (0, K_PAD - k_d)))
    patches = jnp.stack([p_rgb, p_d], axis=0)               # (2, B, s_pad, 160) bf16

    # Both streams in ONE fused pallas_call: stem conv GEMM + 96->384 projection
    # + GAP + sigmoid, stream/batch grid axes parallel, spatial reduction inner.
    gaps = _stem_streams(patches, params["w_conv"], params["w_proj"],
                         true_s=S, ts=ts)                    # (2, B, 384) f32
    gap_rgb, gap_d = gaps[0], gaps[1]

    # Multi-head classifier (packed, split GEMMs) in Pallas.
    gap, heads = head_call(gap_rgb, gap_d, params)
    op = heads[:, 0:1]
    op_rgb = heads[:, 1:2]
    op_d = heads[:, 2:3]
    op_adv = heads[:, 3:4]
    return gap, op, op_rgb, op_d, op_adv


if __name__ == "__main__":
    key = jax.random.PRNGKey(0)
    k_img, k_par = jax.random.split(key)
    img = jax.random.normal(k_img, (2, 4, 16, 16), jnp.float32)   # small NCHW input
    params = init_params(k_par)

    outs = rgbdmh_forward(img, params)
    jax.block_until_ready(outs)

    gap, op, op_rgb, op_d, op_adv = outs
    assert gap.shape == (2, 768)
    assert op.shape == (2, 1) and op_rgb.shape == (2, 1)
    assert op_d.shape == (2, 1) and op_adv.shape == (2, 1)
    print("KERNEL_OK")
</pallas_src>

<mosaic_0001>
module attributes {stable_mosaic.version = 11 : i64} {
  func.func @_stem_kernel(%arg0: i32, %arg1: i32, %arg2: i32, %arg3: memref<1x1x64x160xbf16, #tpu.memory_space<vmem>>, %arg4: memref<1x160x128xbf16, #tpu.memory_space<vmem>>, %arg5: memref<1x128x384xbf16, #tpu.memory_space<vmem>>, %arg6: memref<1x1x8x384xf32, #tpu.memory_space<vmem>>, %arg7: memref<1x384xf32, #tpu.memory_space<vmem>>) attributes {dimension_semantics = [#tpu.dimension_semantics<parallel>, #tpu.dimension_semantics<parallel>, #tpu.dimension_semantics<arbitrary>], iteration_bounds = array<i64: 2, 2, 1>, scalar_prefetch = 0 : i64, scratch_operands = 1 : i64, tpu.core_type = #tpu.core_type<tc>, window_params = [{transform_indices = @transform_0, window_bounds = array<i64: 1, 1, 64, 160>}, {transform_indices = @transform_1, window_bounds = array<i64: 1, 160, 128>}, {transform_indices = @transform_2, window_bounds = array<i64: 1, 128, 384>}, {transform_indices = @transform_3, window_bounds = array<i64: 1, 1, 8, 384>}]} {
    %c0_i32 = arith.constant 0 : i32
    %0 = arith.cmpi eq, %arg2, %c0_i32 : i32
    %1 = arith.extui %0 : i1 to i32
    %c0_i32_0 = arith.constant 0 : i32
    %2 = arith.cmpi ne, %1, %c0_i32_0 : i32
    scf.if %2 {
      %cst_19 = arith.constant 0.000000e+00 : f32
      %22 = vector.broadcast %cst_19 : f32 to vector<1x384xf32>
      %c0_20 = arith.constant 0 : index
      %c0_21 = arith.constant 0 : index
      %23 = vector.load %arg7[%c0_20, %c0_21] : memref<1x384xf32, #tpu.memory_space<vmem>>, vector<1x384xf32>
      tpu.vector_store %arg7[%c0_20, %c0_21], %22 {strides = array<i32>} : memref<1x384xf32, #tpu.memory_space<vmem>>, vector<1x384xf32>,
    } else {
    }
    %c0 = arith.constant 0 : index
    %c0_1 = arith.constant 0 : index
    %c0_2 = arith.constant 0 : index
    %c0_3 = arith.constant 0 : index
    %3 = vector.load %arg3[%c0, %c0_1, %c0_2, %c0_3] : memref<1x1x64x160xbf16, #tpu.memory_space<vmem>>, vector<1x1x64x160xbf16>
    %4 = vector.shape_cast %3 : vector<1x1x64x160xbf16> to vector<64x160xbf16>
    %c0_4 = arith.constant 0 : index
    %c0_5 = arith.constant 0 : index
    %c0_6 = arith.constant 0 : index
    %5 = vector.load %arg4[%c0_4, %c0_5, %c0_6] : memref<1x160x128xbf16, #tpu.memory_space<vmem>>, vector<1x160x128xbf16>
    %6 = vector.shape_cast %5 : vector<1x160x128xbf16> to vector<160x128xbf16>
    %cst = arith.constant dense<0.000000e+00> : vector<64x128xf32>
    %7 = tpu.matmul %4, %6, %cst {dimension_numbers = #tpu.dot_dimension_numbers<[1], [0], [0], [1], [0, 0, 1, 1], [], []>} : vector<64x160xbf16>, vector<160x128xbf16>, vector<64x128xf32> -> vector<64x128xf32>
    %8 = arith.truncf %7 : vector<64x128xf32> to vector<64x128xbf16>
    %c0_7 = arith.constant 0 : index
    %c0_8 = arith.constant 0 : index
    %c0_9 = arith.constant 0 : index
    %9 = vector.load %arg5[%c0_7, %c0_8, %c0_9] : memref<1x128x384xbf16, #tpu.memory_space<vmem>>, vector<1x128x384xbf16>
    %10 = vector.shape_cast %9 : vector<1x128x384xbf16> to vector<128x384xbf16>
    %cst_10 = arith.constant dense<0.000000e+00> : vector<64x384xf32>
    %11 = tpu.matmul %8, %10, %cst_10 {dimension_numbers = #tpu.dot_dimension_numbers<[1], [0], [0], [1], [0, 0, 1, 1], [], []>} : vector<64x128xbf16>, vector<128x384xbf16>, vector<64x384xf32> -> vector<64x384xf32>
    %cst_11 = arith.constant 0.000000e+00 : f32
    %12 = vector.broadcast %cst_11 : f32 to vector<64x384xf32>
    %13 = arith.maximumf %11, %12 : vector<64x384xf32>
    %c0_12 = arith.constant 0 : index
    %c0_13 = arith.constant 0 : index
    %14 = vector.load %arg7[%c0_12, %c0_13] : memref<1x384xf32, #tpu.memory_space<vmem>>, vector<1x384xf32>
    %cst_14 = arith.constant dense<0.000000e+00> : vector<384xf32>
    %15 = vector.multi_reduction <add>, %13, %cst_14 [0] : vector<64x384xf32> to vector<384xf32>
    %16 = vector.shape_cast %15 : vector<384xf32> to vector<1x384xf32>
    %17 = arith.addf %14, %16 : vector<1x384xf32>
    %c0_15 = arith.constant 0 : index
    %c0_16 = arith.constant 0 : index
    %18 = vector.load %arg7[%c0_15, %c0_16] : memref<1x384xf32, #tpu.memory_space<vmem>>, vector<1x384xf32>
    tpu.vector_store %arg7[%c0_15, %c0_16], %17 {strides = array<i32>} : memref<1x384xf32, #tpu.memory_space<vmem>>, vector<1x384xf32>,
    %c0_i32_17 = arith.constant 0 : i32
    %19 = arith.cmpi eq, %arg2, %c0_i32_17 : i32
    %20 = arith.extui %19 : i1 to i32
    %c0_i32_18 = arith.constant 0 : i32
    %21 = arith.cmpi ne, %20, %c0_i32_18 : i32
    scf.if %21 {
      %c0_19 = arith.constant 0 : index
      %c0_20 = arith.constant 0 : index
      %22 = vector.load %arg7[%c0_19, %c0_20] : memref<1x384xf32, #tpu.memory_space<vmem>>, vector<1x384xf32>
      %cst_21 = arith.constant 1.562500e-02 : f32
      %23 = vector.broadcast %cst_21 : f32 to vector<1x384xf32>
      %24 = arith.mulf %22, %23 : vector<1x384xf32>
      %cst_22 = arith.constant 0.000000e+00 : f32
      %25 = vector.broadcast %cst_22 : f32 to vector<1x384xf32>
      %26 = arith.subf %25, %24 : vector<1x384xf32>
      %27 = math.exp %26 : vector<1x384xf32>
      %cst_23 = arith.constant 1.000000e+00 : f32
      %28 = vector.broadcast %cst_23 : f32 to vector<1x384xf32>
      %29 = arith.addf %28, %27 : vector<1x384xf32>
      %cst_24 = arith.constant 1.000000e+00 : f32
      %30 = vector.broadcast %cst_24 : f32 to vector<1x384xf32>
      %31 = arith.divf %30, %29 : vector<1x384xf32>
      %32 = vector.shape_cast %31 : vector<1x384xf32> to vector<1x1x1x384xf32>
      %33 = vector.shape_cast %32 : vector<1x1x1x384xf32> to vector<1x1x1x384xf32>
      %34 = vector.broadcast %33 : vector<1x1x1x384xf32> to vector<1x1x8x384xf32>
      %c0_25 = arith.constant 0 : index
      %c0_26 = arith.constant 0 : index
      %c0_27 = arith.constant 0 : index
      %c0_28 = arith.constant 0 : index
      %35 = vector.load %arg6[%c0_25, %c0_26, %c0_27, %c0_28] : memref<1x1x8x384xf32, #tpu.memory_space<vmem>>, vector<1x1x8x384xf32>
      tpu.vector_store %arg6[%c0_25, %c0_26, %c0_27, %c0_28], %34 {strides = array<i32>} : memref<1x1x8x384xf32, #tpu.memory_space<vmem>>, vector<1x1x8x384xf32>,
    } else {
    }
    return
  }
  func.func @transform_0(%arg0: i32, %arg1: i32, %arg2: i32) -> (i32, i32, i32, i32) {
    %c0_i32 = arith.constant 0 : i32
    %c0_i32_0 = arith.constant 0 : i32
    return %arg0, %arg1, %arg2, %c0_i32 : i32, i32, i32, i32
  }
  func.func @transform_1(%arg0: i32, %arg1: i32, %arg2: i32) -> (i32, i32, i32) {
    %c0_i32 = arith.constant 0 : i32
    %c0_i32_0 = arith.constant 0 : i32
    %c0_i32_1 = arith.constant 0 : i32
    return %arg0, %c0_i32, %c0_i32_0 : i32, i32, i32
  }
  func.func @transform_2(%arg0: i32, %arg1: i32, %arg2: i32) -> (i32, i32, i32) {
    %c0_i32 = arith.constant 0 : i32
    %c0_i32_0 = arith.constant 0 : i32
    %c0_i32_1 = arith.constant 0 : i32
    return %arg0, %c0_i32, %c0_i32_0 : i32, i32, i32
  }
  func.func @transform_3(%arg0: i32, %arg1: i32, %arg2: i32) -> (i32, i32, i32, i32) {
    %c0_i32 = arith.constant 0 : i32
    %c0_i32_0 = arith.constant 0 : i32
    %c0_i32_1 = arith.constant 0 : i32
    return %arg0, %arg1, %c0_i32, %c0_i32_0 : i32, i32, i32, i32
  }
}

module attributes {stable_mosaic.version = 11 : i64} {
  func.func @_head_kernel(%arg0: i32, %arg1: memref<2x384xf32, #tpu.memory_space<vmem>>, %arg2: memref<2x384xf32, #tpu.memory_space<vmem>>, %arg3: memref<384x512xbf16, #tpu.memory_space<vmem>>, %arg4: memref<384x512xbf16, #tpu.memory_space<vmem>>, %arg5: memref<1x512xf32, #tpu.memory_space<vmem>>, %arg6: memref<384x128xbf16, #tpu.memory_space<vmem>>, %arg7: memref<1x128xf32, #tpu.memory_space<vmem>>, %arg8: memref<2x768xf32, #tpu.memory_space<vmem>>, %arg9: memref<2x128xf32, #tpu.memory_space<vmem>>) attributes {dimension_semantics = [#tpu.dimension_semantics<arbitrary>], iteration_bounds = array<i64: 1>, scalar_prefetch = 0 : i64, scratch_operands = 0 : i64, tpu.core_type = #tpu.core_type<tc>, window_params = [{pipeline_mode = #tpu.pipeline_mode<synchronous>, transform_indices = @transform_0, window_bounds = array<i64: 2, 384>}, {pipeline_mode = #tpu.pipeline_mode<synchronous>, transform_indices = @transform_1, window_bounds = array<i64: 2, 384>}, {pipeline_mode = #tpu.pipeline_mode<synchronous>, transform_indices = @transform_2, window_bounds = array<i64: 384, 512>}, {pipeline_mode = #tpu.pipeline_mode<synchronous>, transform_indices = @transform_3, window_bounds = array<i64: 384, 512>}, {pipeline_mode = #tpu.pipeline_mode<synchronous>, transform_indices = @transform_4, window_bounds = array<i64: 1, 512>}, {pipeline_mode = #tpu.pipeline_mode<synchronous>, transform_indices = @transform_5, window_bounds = array<i64: 384, 128>}, {pipeline_mode = #tpu.pipeline_mode<synchronous>, transform_indices = @transform_6, window_bounds = array<i64: 1, 128>}, {pipeline_mode = #tpu.pipeline_mode<synchronous>, transform_indices = @transform_7, window_bounds = array<i64: 2, 768>}, {pipeline_mode = #tpu.pipeline_mode<synchronous>, transform_indices = @transform_8, window_bounds = array<i64: 2, 128>}]} {
    %c0 = arith.constant 0 : index
    %c0_0 = arith.constant 0 : index
    %0 = vector.load %arg1[%c0, %c0_0] : memref<2x384xf32, #tpu.memory_space<vmem>>, vector<2x384xf32>
    %c0_1 = arith.constant 0 : index
    %c0_2 = arith.constant 0 : index
    %1 = vector.load %arg2[%c0_1, %c0_2] : memref<2x384xf32, #tpu.memory_space<vmem>>, vector<2x384xf32>
    %c0_3 = arith.constant 0 : index
    %c0_4 = arith.constant 0 : index
    %2 = vector.load %arg8[%c0_3, %c0_4] : memref<2x768xf32, #tpu.memory_space<vmem>>, vector<2x384xf32>
    tpu.vector_store %arg8[%c0_3, %c0_4], %0 {strides = array<i32>} : memref<2x768xf32, #tpu.memory_space<vmem>>, vector<2x384xf32>,
    %c0_5 = arith.constant 0 : index
    %c384 = arith.constant 384 : index
    %3 = vector.load %arg8[%c0_5, %c384] : memref<2x768xf32, #tpu.memory_space<vmem>>, vector<2x384xf32>
    tpu.vector_store %arg8[%c0_5, %c384], %1 {strides = array<i32>} : memref<2x768xf32, #tpu.memory_space<vmem>>, vector<2x384xf32>,
    %4 = arith.truncf %0 : vector<2x384xf32> to vector<2x384xbf16>
    %c0_6 = arith.constant 0 : index
    %c0_7 = arith.constant 0 : index
    %5 = vector.load %arg3[%c0_6, %c0_7] : memref<384x512xbf16, #tpu.memory_space<vmem>>, vector<384x512xbf16>
    %cst = arith.constant dense<0.000000e+00> : vector<2x512xf32>
    %6 = tpu.matmul %4, %5, %cst {dimension_numbers = #tpu.dot_dimension_numbers<[1], [0], [0], [1], [0, 0, 1, 1], [], []>} : vector<2x384xbf16>, vector<384x512xbf16>, vector<2x512xf32> -> vector<2x512xf32>
    %7 = arith.truncf %1 : vector<2x384xf32> to vector<2x384xbf16>
    %c0_8 = arith.constant 0 : index
    %c0_9 = arith.constant 0 : index
    %8 = vector.load %arg4[%c0_8, %c0_9] : memref<384x512xbf16, #tpu.memory_space<vmem>>, vector<384x512xbf16>
    %cst_10 = arith.constant dense<0.000000e+00> : vector<2x512xf32>
    %9 = tpu.matmul %7, %8, %cst_10 {dimension_numbers = #tpu.dot_dimension_numbers<[1], [0], [0], [1], [0, 0, 1, 1], [], []>} : vector<2x384xbf16>, vector<384x512xbf16>, vector<2x512xf32> -> vector<2x512xf32>
    %10 = arith.addf %6, %9 : vector<2x512xf32>
    %c0_11 = arith.constant 0 : index
    %c0_12 = arith.constant 0 : index
    %11 = vector.load %arg5[%c0_11, %c0_12] : memref<1x512xf32, #tpu.memory_space<vmem>>, vector<1x512xf32>
    %12 = vector.broadcast %11 : vector<1x512xf32> to vector<2x512xf32>
    %13 = arith.addf %10, %12 : vector<2x512xf32>
    %14 = vector.extract_strided_slice %13 {offsets = [0, 0], sizes = [2, 384], strides = [1, 1]} : vector<2x512xf32> to vector<2x384xf32>
    %cst_13 = arith.constant 0.000000e+00 : f32
    %15 = vector.broadcast %cst_13 : f32 to vector<2x384xf32>
    %16 = arith.maximumf %14, %15 : vector<2x384xf32>
    %17 = vector.extract_strided_slice %13 {offsets = [0, 384], sizes = [2, 1], strides = [1, 1]} : vector<2x512xf32> to vector<2x1xf32>
    %18 = vector.extract_strided_slice %13 {offsets = [0, 385], sizes = [2, 1], strides = [1, 1]} : vector<2x512xf32> to vector<2x1xf32>
    %cst_14 = arith.constant 0.000000e+00 : f32
    %19 = vector.broadcast %cst_14 : f32 to vector<2x1xf32>
    %20 = arith.subf %19, %18 : vector<2x1xf32>
    %21 = math.exp %20 : vector<2x1xf32>
    %cst_15 = arith.constant 1.000000e+00 : f32
    %22 = vector.broadcast %cst_15 : f32 to vector<2x1xf32>
    %23 = arith.addf %22, %21 : vector<2x1xf32>
    %cst_16 = arith.constant 1.000000e+00 : f32
    %24 = vector.broadcast %cst_16 : f32 to vector<2x1xf32>
    %25 = arith.divf %24, %23 : vector<2x1xf32>
    %26 = vector.extract_strided_slice %13 {offsets = [0, 386], sizes = [2, 1], strides = [1, 1]} : vector<2x512xf32> to vector<2x1xf32>
    %cst_17 = arith.constant 0.000000e+00 : f32
    %27 = vector.broadcast %cst_17 : f32 to vector<2x1xf32>
    %28 = arith.subf %27, %26 : vector<2x1xf32>
    %29 = math.exp %28 : vector<2x1xf32>
    %cst_18 = arith.constant 1.000000e+00 : f32
    %30 = vector.broadcast %cst_18 : f32 to vector<2x1xf32>
    %31 = arith.addf %30, %29 : vector<2x1xf32>
    %cst_19 = arith.constant 1.000000e+00 : f32
    %32 = vector.broadcast %cst_19 : f32 to vector<2x1xf32>
    %33 = arith.divf %32, %31 : vector<2x1xf32>
    %34 = arith.truncf %16 : vector<2x384xf32> to vector<2x384xbf16>
    %c0_20 = arith.constant 0 : index
    %c0_21 = arith.constant 0 : index
    %35 = vector.load %arg6[%c0_20, %c0_21] : memref<384x128xbf16, #tpu.memory_space<vmem>>, vector<384x128xbf16>
    %cst_22 = arith.constant dense<0.000000e+00> : vector<2x128xf32>
    %36 = tpu.matmul %34, %35, %cst_22 {dimension_numbers = #tpu.dot_dimension_numbers<[1], [0], [0], [1], [0, 0, 1, 1], [], []>} : vector<2x384xbf16>, vector<384x128xbf16>, vector<2x128xf32> -> vector<2x128xf32>
    %c0_23 = arith.constant 0 : index
    %c0_24 = arith.constant 0 : index
    %37 = vector.load %arg7[%c0_23, %c0_24] : memref<1x128xf32, #tpu.memory_space<vmem>>, vector<1x128xf32>
    %38 = vector.broadcast %37 : vector<1x128xf32> to vector<2x128xf32>
    %39 = arith.addf %36, %38 : vector<2x128xf32>
    %40 = vector.extract_strided_slice %39 {offsets = [0, 0], sizes = [2, 1], strides = [1, 1]} : vector<2x128xf32> to vector<2x1xf32>
    %cst_25 = arith.constant 0.000000e+00 : f32
    %41 = vector.broadcast %cst_25 : f32 to vector<2x1xf32>
    %42 = arith.subf %41, %40 : vector<2x1xf32>
    %43 = math.exp %42 : vector<2x1xf32>
    %cst_26 = arith.constant 1.000000e+00 : f32
    %44 = vector.broadcast %cst_26 : f32 to vector<2x1xf32>
    %45 = arith.addf %44, %43 : vector<2x1xf32>
    %cst_27 = arith.constant 1.000000e+00 : f32
    %46 = vector.broadcast %cst_27 : f32 to vector<2x1xf32>
    %47 = arith.divf %46, %45 : vector<2x1xf32>
    %48 = tpu.iota {dimensions = array<i32: 1>} : vector<2x128xi32>
    %c0_i32 = arith.constant 0 : i32
    %49 = vector.broadcast %c0_i32 : i32 to vector<2x128xi32>
    %50 = arith.cmpi eq, %48, %49 : vector<2x128xi32>
    %cst_28 = arith.constant 0.000000e+00 : f32
    %51 = vector.shape_cast %17 : vector<2x1xf32> to vector<2x1xf32>
    %52 = vector.broadcast %51 : vector<2x1xf32> to vector<2x128xf32>
    %53 = vector.broadcast %cst_28 : f32 to vector<2x128xf32>
    %54 = arith.select %50, %52, %53 : vector<2x128xi1>, vector<2x128xf32>
    %c1_i32 = arith.constant 1 : i32
    %55 = vector.broadcast %c1_i32 : i32 to vector<2x128xi32>
    %56 = arith.cmpi eq, %48, %55 : vector<2x128xi32>
    %cst_29 = arith.constant 0.000000e+00 : f32
    %57 = vector.shape_cast %25 : vector<2x1xf32> to vector<2x1xf32>
    %58 = vector.broadcast %57 : vector<2x1xf32> to vector<2x128xf32>
    %59 = vector.broadcast %cst_29 : f32 to vector<2x128xf32>
    %60 = arith.select %56, %58, %59 : vector<2x128xi1>, vector<2x128xf32>
    %61 = arith.addf %54, %60 : vector<2x128xf32>
    %c2_i32 = arith.constant 2 : i32
    %62 = vector.broadcast %c2_i32 : i32 to vector<2x128xi32>
    %63 = arith.cmpi eq, %48, %62 : vector<2x128xi32>
    %cst_30 = arith.constant 0.000000e+00 : f32
    %64 = vector.shape_cast %33 : vector<2x1xf32> to vector<2x1xf32>
    %65 = vector.broadcast %64 : vector<2x1xf32> to vector<2x128xf32>
    %66 = vector.broadcast %cst_30 : f32 to vector<2x128xf32>
    %67 = arith.select %63, %65, %66 : vector<2x128xi1>, vector<2x128xf32>
    %68 = arith.addf %61, %67 : vector<2x128xf32>
    %c3_i32 = arith.constant 3 : i32
    %69 = vector.broadcast %c3_i32 : i32 to vector<2x128xi32>
    %70 = arith.cmpi eq, %48, %69 : vector<2x128xi32>
    %cst_31 = arith.constant 0.000000e+00 : f32
    %71 = vector.shape_cast %47 : vector<2x1xf32> to vector<2x1xf32>
    %72 = vector.broadcast %71 : vector<2x1xf32> to vector<2x128xf32>
    %73 = vector.broadcast %cst_31 : f32 to vector<2x128xf32>
    %74 = arith.select %70, %72, %73 : vector<2x128xi1>, vector<2x128xf32>
    %75 = arith.addf %68, %74 : vector<2x128xf32>
    %c0_32 = arith.constant 0 : index
    %c0_33 = arith.constant 0 : index
    %76 = vector.load %arg9[%c0_32, %c0_33] : memref<2x128xf32, #tpu.memory_space<vmem>>, vector<2x128xf32>
    tpu.vector_store %arg9[%c0_32, %c0_33], %75 {strides = array<i32>} : memref<2x128xf32, #tpu.memory_space<vmem>>, vector<2x128xf32>,
    return
  }
  func.func @transform_0(%arg0: i32) -> (i32, i32) {
    %c0_i32 = arith.constant 0 : i32
    %c0_i32_0 = arith.constant 0 : i32
    %c0_i32_1 = arith.constant 0 : i32
    return %c0_i32, %c0_i32_0 : i32, i32
  }
  func.func @transform_1(%arg0: i32) -> (i32, i32) {
    %c0_i32 = arith.constant 0 : i32
    %c0_i32_0 = arith.constant 0 : i32
    %c0_i32_1 = arith.constant 0 : i32
    return %c0_i32, %c0_i32_0 : i32, i32
  }
  func.func @transform_2(%arg0: i32) -> (i32, i32) {
    %c0_i32 = arith.constant 0 : i32
    %c0_i32_0 = arith.constant 0 : i32
    %c0_i32_1 = arith.constant 0 : i32
    return %c0_i32, %c0_i32_0 : i32, i32
  }
  func.func @transform_3(%arg0: i32) -> (i32, i32) {
    %c0_i32 = arith.constant 0 : i32
    %c0_i32_0 = arith.constant 0 : i32
    %c0_i32_1 = arith.constant 0 : i32
    return %c0_i32, %c0_i32_0 : i32, i32
  }
  func.func @transform_4(%arg0: i32) -> (i32, i32) {
    %c0_i32 = arith.constant 0 : i32
    %c0_i32_0 = arith.constant 0 : i32
    %c0_i32_1 = arith.constant 0 : i32
    return %c0_i32, %c0_i32_0 : i32, i32
  }
  func.func @transform_5(%arg0: i32) -> (i32, i32) {
    %c0_i32 = arith.constant 0 : i32
    %c0_i32_0 = arith.constant 0 : i32
    %c0_i32_1 = arith.constant 0 : i32
    return %c0_i32, %c0_i32_0 : i32, i32
  }
  func.func @transform_6(%arg0: i32) -> (i32, i32) {
    %c0_i32 = arith.constant 0 : i32
    %c0_i32_0 = arith.constant 0 : i32
    %c0_i32_1 = arith.constant 0 : i32
    return %c0_i32, %c0_i32_0 : i32, i32
  }
  func.func @transform_7(%arg0: i32) -> (i32, i32) {
    %c0_i32 = arith.constant 0 : i32
    %c0_i32_0 = arith.constant 0 : i32
    %c0_i32_1 = arith.constant 0 : i32
    return %c0_i32, %c0_i32_0 : i32, i32
  }
  func.func @transform_8(%arg0: i32) -> (i32, i32) {
    %c0_i32 = arith.constant 0 : i32
    %c0_i32_0 = arith.constant 0 : i32
    %c0_i32_1 = arith.constant 0 : i32
    return %c0_i32, %c0_i32_0 : i32, i32
  }
}

</mosaic_0001>

<llo_original>
// kernel: rgbdmh_forward.2
$region0: #{rgbdmh_forward.2}
  #allocation0 [shape = 'u32[]', space=smem, size = 0x4, offset = 0x4, fixed_abs, tag = 'smem constant byte address 0x4 - core index']
  #allocation1 [shape = 'u32[72,128]{1,0:T(1,128)}', space=vmem, size = 0x9000, scoped, tag = 'internal scratch']
  #allocation2 [shape = 'f32[1,384]{1,0:T(1,128)}', space=vmem, size = 0x600, scoped, tag = 'scratch operand']
  %s0 = inlined_call_operand.vmem [shape: bf16[2,2,64,160], index: 0, kind: input, shape index: {}]
  %s1 = inlined_call_operand.vmem [shape: bf16[2,160,128], index: 1, kind: input, shape index: {}]
  %s2 = inlined_call_operand.vmem [shape: bf16[2,128,384], index: 2, kind: input, shape index: {}]
  %s3 = inlined_call_operand.vmem [shape: f32[2,2,8,384], index: 3, kind: output, shape index: {}]
  %s4 = sld [smem:[#allocation0]]
  $region53: #{rgbdmh_forward.2} parent=0
    _
  %s6 = ssub.s32 1, %s4
  %s7 = scalar_select 0, %s6, %s4
  loop: start=0, step=1, limit=6
  $region2: #{rgbdmh_forward.2} parent=0 // loop_pre_header
    _
  $region3: #{rgbdmh_forward.2} parent=0 // loop_header
    %s9 = sphi 0, %s13
    %p10 = scmp.ge.s32.totalorder %s9, 6
    %s16 = sphi 0, %s35
    %s17 = sphi 0, %s31
    %s18 = sphi 0, %s27
    %s19 = sphi 0, %s16
    %s20 = sphi 0, %s17
    %s21 = sphi 0, %s18
    %s22 = sphi 0, %s19
    %s23 = sphi 0, %s20
    %s24 = sphi 0, %s21
    %s42 = sphi 0, %s44
    %s45 = sphi 0, %s42
    %s46 = sphi 0, %s45
    %s62 = sphi 0, %s46
    %s68 = sphi 0, %s70
    %s71 = sphi 0, %s68
    %s72 = sphi 0, %s71
    %s88 = sphi 0, %s72
    %s94 = sphi 0, %s96
    %s97 = sphi 0, %s94
    %s98 = sphi 0, %s97
    %s114 = sphi 0, %s98
    %s122 = sphi 0, %s124
    %s125 = sphi 0, %s122
    %s126 = sphi 0, %s125
    %s142 = sphi 0, %s126
  $region4: #{rgbdmh_forward.2} parent=0 // loop_header_branch
    %12 = sbr.rel (%p10) target = $region8
  $region5: #{rgbdmh_forward.2} parent=0 // loop_body
    %s14 = ssub.s32 %s9, 1
    %s15 = ssub.s32 %s9, 2
    %s25 = sadd.s32 1, %s18
    %p26 = scmp.ge.s32.totalorder %s25, 1
    %s27 = scalar_select %p26, 0, %s25
    %s28 = sadd.s32 1, %s17
    %s29 = scalar_select %p26, %s28, %s17
    %p30 = scmp.ge.s32.totalorder %s29, 2
    %s31 = scalar_select %p30, 0, %s29
    %s32 = sadd.s32 1, %s16
    %s33 = scalar_select %p30, %s32, %s16
    %p34 = scmp.ge.s32.totalorder %s33, 2
    %s35 = scalar_select %p34, 0, %s33
    %s36 = ssub.s32 %s16, %s35
    %s37 = ssub.s32 %s17, %s31
    %s38 = sor.u32 %s36, %s37
    %s39 = ssub.s32 %s18, %s27
    %s40 = sor.u32 %s38, %s39
    %p41 = scmp.eq.s32.totalorder %s40, 0
    %s43 = sadd.s32 %s42, 1
    %s44 = scalar_select %p41, %s42, %s43
    %p47 = pneg %p41
    %p48 = scmp.eq.s32.totalorder %s9, 3
    %p49 = por %p47, %p48
    %p50 = scmp.ne.s32.totalorder %s42, %s45
    %p51 = scmp.eq.s32.totalorder %s9, 0
    %p52 = por %p50, %p51
    %p53 = scmp.ne.s32.totalorder %s42, %s45
    %p54 = scmp.eq.s32.totalorder %s14, 3
    %p55 = por %p53, %p54
    %p56 = scmp.ne.s32.totalorder %s45, %s46
    %p57 = scmp.eq.s32.totalorder %s14, 0
    %p58 = por %p56, %p57
    %p59 = scmp.ne.s32.totalorder %s45, %s46
    %p60 = scmp.eq.s32.totalorder %s15, 3
    %p61 = por %p59, %p60
    %p63 = scmp.ne.s32.totalorder %s46, %s62
    %p64 = scmp.eq.s32.totalorder %s15, 0
    %p65 = por %p63, %p64
    %s66 = ssub.s32 %s16, %s35
    %p67 = scmp.eq.s32.totalorder %s66, 0
    %s69 = sadd.s32 %s68, 1
    %s70 = scalar_select %p67, %s68, %s69
    %p73 = pneg %p67
    %p74 = scmp.eq.s32.totalorder %s9, 3
    %p75 = por %p73, %p74
    %p76 = scmp.ne.s32.totalorder %s68, %s71
    %p77 = scmp.eq.s32.totalorder %s9, 0
    %p78 = por %p76, %p77
    %p79 = scmp.ne.s32.totalorder %s68, %s71
    %p80 = scmp.eq.s32.totalorder %s14, 3
    %p81 = por %p79, %p80
    %p82 = scmp.ne.s32.totalorder %s71, %s72
    %p83 = scmp.eq.s32.totalorder %s14, 0
    %p84 = por %p82, %p83
    %p85 = scmp.ne.s32.totalorder %s71, %s72
    %p86 = scmp.eq.s32.totalorder %s15, 3
    %p87 = por %p85, %p86
    %p89 = scmp.ne.s32.totalorder %s72, %s88
    %p90 = scmp.eq.s32.totalorder %s15, 0
    %p91 = por %p89, %p90
    %s92 = ssub.s32 %s16, %s35
    %p93 = scmp.eq.s32.totalorder %s92, 0
    %s95 = sadd.s32 %s94, 1
    %s96 = scalar_select %p93, %s94, %s95
    %p99 = pneg %p93
    %p100 = scmp.eq.s32.totalorder %s9, 3
    %p101 = por %p99, %p100
    %p102 = scmp.ne.s32.totalorder %s94, %s97
    %p103 = scmp.eq.s32.totalorder %s9, 0
    %p104 = por %p102, %p103
    %p105 = scmp.ne.s32.totalorder %s94, %s97
    %p106 = scmp.eq.s32.totalorder %s14, 3
    %p107 = por %p105, %p106
    %p108 = scmp.ne.s32.totalorder %s97, %s98
    %p109 = scmp.eq.s32.totalorder %s14, 0
    %p110 = por %p108, %p109
    %p111 = scmp.ne.s32.totalorder %s97, %s98
    %p112 = scmp.eq.s32.totalorder %s15, 3
    %p113 = por %p111, %p112
    %p115 = scmp.ne.s32.totalorder %s98, %s114
    %p116 = scmp.eq.s32.totalorder %s15, 0
    %p117 = por %p115, %p116
    %s118 = ssub.s32 %s16, %s35
    %s119 = ssub.s32 %s17, %s31
    %s120 = sor.u32 %s118, %s119
    %p121 = scmp.eq.s32.totalorder %s120, 0
    %s123 = sadd.s32 %s122, 1
    %s124 = scalar_select %p121, %s122, %s123
    %p127 = pneg %p121
    %p128 = scmp.eq.s32.totalorder %s9, 3
    %p129 = por %p127, %p128
    %p130 = scmp.ne.s32.totalorder %s122, %s125
    %p131 = scmp.eq.s32.totalorder %s9, 0
    %p132 = por %p130, %p131
    %p133 = scmp.ne.s32.totalorder %s122, %s125
    %p134 = scmp.eq.s32.totalorder %s14, 3
    %p135 = por %p133, %p134
    %p136 = scmp.ne.s32.totalorder %s125, %s126
    %p137 = scmp.eq.s32.totalorder %s14, 0
    %p138 = por %p136, %p137
    %p139 = scmp.ne.s32.totalorder %s125, %s126
    %p140 = scmp.eq.s32.totalorder %s15, 3
    %p141 = por %p139, %p140
    %p143 = scmp.ne.s32.totalorder %s126, %s142
    %p144 = scmp.eq.s32.totalorder %s15, 0
    %p145 = por %p143, %p144
    %p146 = scmp.le.s32.totalorder 1, %s9
    %p147 = scmp.lt.s32.totalorder %s9, 5
    %p148 = pnand %p146, %p147
    %p149 = pneg %p148
    // Predicated region
    $region9: #{rgbdmh_forward.2} parent=5 // pred_check
      _
    $region10: #{rgbdmh_forward.2} parent=5 // pred_check_branch
      %151 = sbr.rel (%p148) target = $region12
    $region11: #{rgbdmh_forward.2} parent=5 // pred_region
      %s152 = ssub.s32 %s9, 1
    $region12: #{rgbdmh_forward.2} parent=5 // pred_fallthru
      _
    %p153 = scmp.lt.s32.totalorder %s9, 4
    // Predicated region
    $region13: #{rgbdmh_forward.2} parent=5 // pred_check
      %p154 = pneg %p153
    $region14: #{rgbdmh_forward.2} parent=5 // pred_check_branch
      %156 = sbr.rel (%p154) target = $region16
    $region15: #{rgbdmh_forward.2} parent=5 // pred_region
      // Predicated region
      $region17: #{rgbdmh_forward.2} parent=15 // pred_check
        %p157 = pneg %p52
      $region18: #{rgbdmh_forward.2} parent=15 // pred_check_branch
        %159 = sbr.rel (%p157) target = $region20
      $region19: #{rgbdmh_forward.2} parent=15 // pred_region
        %s160 = smul.u32 8, %s18
        %p161 = scmp.lt.s32.totalorder %s16, 1
        %s162 = scalar_select %p161, %s16, 1
        %p163 = scmp.lt.s32.totalorder %s17, 1
        %s164 = scalar_select %p163, %s17, 1
        %p165 = scmp.lt.s32.totalorder %s160, 7
        %s166 = scalar_select %p165, %s160, 7
        %s167 = smul.addr %s166, 2
        %s168 = smul.addr %s164, 16
        %s169 = sadd.s32 %s167, %s168
        %s170 = smul.addr %s162, 32
        %s171 = sadd.s32 %s169, %s170
        %s172 = smul.addr %s171, 4
        %s173 = scalar_lea.vmem %s0, %s172
        %s174 = smul.u32 8, %s18
      $region20: #{rgbdmh_forward.2} parent=15 // pred_fallthru
        _
      // Predicated region
      $region21: #{rgbdmh_forward.2} parent=15 // pred_check
        %p175 = pneg %p78
      $region22: #{rgbdmh_forward.2} parent=15 // pred_check_branch
        %177 = sbr.rel (%p175) target = $region24
      $region23: #{rgbdmh_forward.2} parent=15 // pred_region
        %p178 = scmp.lt.s32.totalorder %s16, 1
        %s179 = scalar_select %p178, %s16, 1
        %s180 = smul.addr %s179, 20
        %s181 = smul.addr %s180, 4
        %s182 = scalar_lea.vmem %s1, %s181
      $region24: #{rgbdmh_forward.2} parent=15 // pred_fallthru
        _
      // Predicated region
      $region25: #{rgbdmh_forward.2} parent=15 // pred_check
        %p183 = pneg %p104
      $region26: #{rgbdmh_forward.2} parent=15 // pred_check_branch
        %185 = sbr.rel (%p183) target = $region28
      $region27: #{rgbdmh_forward.2} parent=15 // pred_region
        %p186 = scmp.lt.s32.totalorder %s16, 1
        %s187 = scalar_select %p186, %s16, 1
        %s188 = smul.addr %s187, 48
        %s189 = smul.addr %s188, 4
        %s190 = scalar_lea.vmem %s2, %s189
      $region28: #{rgbdmh_forward.2} parent=15 // pred_fallthru
        _
    $region16: #{rgbdmh_forward.2} parent=5 // pred_fallthru
      _
    %p191 = scmp.le.s32.totalorder 1, %s9
    %p192 = scmp.lt.s32.totalorder %s9, 5
    %p193 = pnand %p191, %p192
    %p194 = pneg %p193
    // Predicated region
    $region29: #{rgbdmh_forward.2} parent=5 // pred_check
      _
    $region30: #{rgbdmh_forward.2} parent=5 // pred_check_branch
      %196 = sbr.rel (%p193) target = $region32
    $region31: #{rgbdmh_forward.2} parent=5 // pred_region
      %s197 = ssub.s32 %s9, 1
      %s198 = smul.u32 8, %s21
      %p199 = scmp.lt.s32.totalorder %s19, 1
      %s200 = scalar_select %p199, %s19, 1
      %p201 = scmp.lt.s32.totalorder %s20, 1
      %s202 = scalar_select %p201, %s20, 1
      %p203 = scmp.lt.s32.totalorder %s198, 7
      %s204 = scalar_select %p203, %s198, 7
      %s205 = smul.addr %s204, 2
      %s206 = smul.addr %s202, 16
      %s207 = sadd.s32 %s205, %s206
      %s208 = smul.addr %s200, 32
      %s209 = sadd.s32 %s207, %s208
      %s210 = smul.addr %s209, 4
      %s211 = scalar_lea.vmem %s0, %s210
      %p212 = pneg %p58
      %p213 = pneg %p55
      %p214 = scmp.lt.s32.totalorder %s19, 1
      %s215 = scalar_select %p214, %s19, 1
      %s216 = smul.addr %s215, 20
      %s217 = smul.addr %s216, 4
      %s218 = scalar_lea.vmem %s1, %s217
      %p219 = pneg %p84
      %p220 = pneg %p81
      %p221 = scmp.lt.s32.totalorder %s19, 1
      %s222 = scalar_select %p221, %s19, 1
      %s223 = smul.addr %s222, 48
      %s224 = smul.addr %s223, 4
      %s225 = scalar_lea.vmem %s2, %s224
      %p226 = pneg %p110
      %p227 = pneg %p107
      %p228 = pneg %p138
      %p229 = pneg %p135
      %p230 = scmp.lt.s32.totalorder %s19, 1
      %s231 = scalar_select %p230, %s19, 1
      %p232 = scmp.lt.s32.totalorder %s20, 1
      %s233 = scalar_select %p232, %s20, 1
      %s234 = smul.addr %s233, 3
      %s235 = smul.addr %s231, 6
      %s236 = sadd.s32 %s234, %s235
      %s237 = smul.addr %s236, 8
      %s238 = scalar_lea.vmem %s3, %s237
      %s239 = smul.u32 8, %s21
      %p240 = scmp.lt.s32.totalorder %s19, 1
      %s241 = scalar_select %p240, %s19, 1
      %p242 = scmp.lt.s32.totalorder %s20, 1
      %s243 = scalar_select %p242, %s20, 1
      %p244 = scmp.lt.s32.totalorder %s239, 7
      %s245 = scalar_select %p244, %s239, 7
      %s246 = smul.addr %s245, 2
      %s247 = smul.addr %s243, 16
      %s248 = sadd.s32 %s246, %s247
      %s249 = smul.addr %s241, 32
      %s250 = sadd.s32 %s248, %s249
      %s251 = smul.addr %s250, 4
      %s252 = scalar_lea.vmem %s0, %s251
      %s253 = smul.u32 8, %s21
      %p254 = scmp.lt.s32.totalorder %s19, 1
      %s255 = scalar_select %p254, %s19, 1
      %s256 = smul.addr %s255, 20
      %s257 = smul.addr %s256, 4
      %s258 = scalar_lea.vmem %s1, %s257
      %p259 = scmp.lt.s32.totalorder %s19, 1
      %s260 = scalar_select %p259, %s19, 1
      %s261 = smul.addr %s260, 48
      %s262 = smul.addr %s261, 4
      %s263 = scalar_lea.vmem %s2, %s262
      %p264 = scmp.lt.s32.totalorder %s19, 1
      %s265 = scalar_select %p264, %s19, 1
      %p266 = scmp.lt.s32.totalorder %s20, 1
      %s267 = scalar_select %p266, %s20, 1
      %s268 = smul.addr %s267, 3
      %s269 = smul.addr %s265, 6
      %s270 = sadd.s32 %s268, %s269
      %s271 = smul.addr %s270, 8
      %s272 = scalar_lea.vmem %s3, %s271
      %p274 = scmp.eq.s32.totalorder %s21, 0
      // Predicated region
      $region33: #{rgbdmh_forward.2} parent=31 // pred_check
        %p275 = pneg %p274
      $region34: #{rgbdmh_forward.2} parent=31 // pred_check_branch
        %277 = sbr.rel (%p275) target = $region36
      $region35: #{rgbdmh_forward.2} parent=31 // pred_region
        %v278 = vlaneseq
        %vm279 = vcmp.ge.s32.totalorder %v278, 0
        %vm280 = vcmp.lt.s32.totalorder %v278, 384
        %vm281 = vmand %vm279, %vm280
        %282 = vst.msk [vmem:[#allocation2] sm:$0x7] %vm281, 0.0
      $region36: #{rgbdmh_forward.2} parent=31 // pred_fallthru
        _
      %v283 = vld [vmem:[%s252] sm:$0xff]
      %v284 = vld [vmem:[%s252 + $0x8] sm:$0xff]
      %v285 = vld [vmem:[%s252 + $0x10] sm:$0xff]
      %v286 = vld [vmem:[%s252 + $0x18] sm:$0xff]
      %v287 = vld [vmem:[%s252 + $0x20] sm:$0xff]
      %v288 = vld [vmem:[%s252 + $0x28] sm:$0xff]
      %v289 = vld [vmem:[%s252 + $0x30] sm:$0xff]
      %v290 = vld [vmem:[%s252 + $0x38] sm:$0xff]
      %v291 = vld [vmem:[%s258] sm:$0xf]
      %v292 = vld [vmem:[%s258 + $0x4] sm:$0xf]
      %v293 = vld [vmem:[%s258 + $0x8] sm:$0xf]
      %v294 = vld [vmem:[%s258 + $0xc] sm:$0xf]
      %v295 = vld [vmem:[%s258 + $0x10] sm:$0xf]
      %v296 = vld [vmem:[%s258 + $0x14] sm:$0xf]
      %v297 = vld [vmem:[%s258 + $0x18] sm:$0xf]
      %v298 = vld [vmem:[%s258 + $0x1c] sm:$0xf]
      %v299 = vld [vmem:[%s258 + $0x20] sm:$0xf]
      %v300 = vld [vmem:[%s258 + $0x24] sm:$0xf]
      %v301 = vld [vmem:[%s258 + $0x28] sm:$0xf]
      %v302 = vld [vmem:[%s258 + $0x2c] sm:$0xf]
      %v303 = vld [vmem:[%s258 + $0x30] sm:$0xf]
      %v304 = vld [vmem:[%s258 + $0x34] sm:$0xf]
      %v305 = vld [vmem:[%s258 + $0x38] sm:$0xf]
      %v306 = vld [vmem:[%s258 + $0x3c] sm:$0xf]
      %v307 = vld [vmem:[%s258 + $0x40] sm:$0xf]
      %v308 = vld [vmem:[%s258 + $0x44] sm:$0xf]
      %v309 = vld [vmem:[%s258 + $0x48] sm:$0xf]
      %v310 = vld [vmem:[%s258 + $0x4c] sm:$0xf]
      %v319 = vunpack.c.l.b16 %v283
      %v320 = vunpack.c.h.b16 %v283
      %v321 = vunpack.c.l.b16 %v284
      %v322 = vunpack.c.h.b16 %v284
      %v323 = vunpack.c.l.b16 %v285
      %v324 = vunpack.c.h.b16 %v285
      %v325 = vunpack.c.l.b16 %v286
      %v326 = vunpack.c.h.b16 %v286
      %v327 = vunpack.c.l.b16 %v287
      %v328 = vunpack.c.h.b16 %v287
      %v329 = vunpack.c.l.b16 %v288
      %v330 = vunpack.c.h.b16 %v288
      %v331 = vunpack.c.l.b16 %v289
      %v332 = vunpack.c.h.b16 %v289
      %v333 = vunpack.c.l.b16 %v290
      %v334 = vunpack.c.h.b16 %v290
      %v335 = vpack.c.b16 %v321, %v319
      %v336 = vpack.c.b16 %v322, %v320
      %v337 = vpack.c.b16 %v325, %v323
      %v338 = vpack.c.b16 %v326, %v324
      %v339 = vpack.c.b16 %v329, %v327
      %v340 = vpack.c.b16 %v330, %v328
      %v341 = vpack.c.b16 %v333, %v331
      %v342 = vpack.c.b16 %v334, %v332
      %v367 = vunpack.c.l.b16 %v291
      %v368 = vunpack.c.l.b16 %v292
      %v369 = vunpack.c.l.b16 %v293
      %v370 = vunpack.c.l.b16 %v294
      %v371 = vunpack.c.l.b16 %v295
      %v372 = vunpack.c.l.b16 %v296
      %v373 = vunpack.c.l.b16 %v297
      %v374 = vunpack.c.l.b16 %v298
      %v375 = vunpack.c.l.b16 %v299
      %v376 = vunpack.c.l.b16 %v300
      %v377 = vunpack.c.l.b16 %v301
      %v378 = vunpack.c.l.b16 %v302
      %v379 = vunpack.c.l.b16 %v303
      %v380 = vunpack.c.l.b16 %v304
      %v381 = vunpack.c.l.b16 %v305
      %v382 = vunpack.c.l.b16 %v306
      %v383 = vunpack.c.l.b16 %v307
      %v384 = vunpack.c.l.b16 %v308
      %v385 = vunpack.c.l.b16 %v309
      %v386 = vunpack.c.l.b16 %v310
      %v387 = vpack.c.b16 %v368, %v367
      %v388 = vpack.c.b16 %v370, %v369
      %v389 = vpack.c.b16 %v372, %v371
      %v390 = vpack.c.b16 %v374, %v373
      %v391 = vpack.c.b16 %v376, %v375
      %v392 = vpack.c.b16 %v378, %v377
      %v393 = vpack.c.b16 %v380, %v379
      %v394 = vpack.c.b16 %v382, %v381
      %v395 = vpack.c.b16 %v384, %v383
      %v396 = vpack.c.b16 %v386, %v385
      %vm407 = vcmask 261120
      %v409 = vsel %vm407, %v336, 0
      %v412 = vsel %vm407, %v338, 0
      %v415 = vsel %vm407, %v340, 0
      %v418 = vsel %vm407, %v342, 0
      %420 = vmatpush.bf16.msra.mxu0 %v394
      %421 = vmatpush.bf16.msra.mxu0 %v393
      %422 = vmatpush.bf16.msra.mxu0 %v392
      %423 = vmatpush.bf16.msra.mxu0 %v391
      %424 = vmatpush.bf16.msra.mxu0 %v390
      %425 = vmatpush.bf16.msra.mxu0 %v389
      %426 = vmatpush.bf16.msra.mxu0 %v388
      %427 = vmatpush.bf16.msra.mxu0 %v387
      %428 = vmatmul.bf16.gmra.mxu0 %v335
      %v429 = vpop.f32.mrf.mxu0
      %v430 = vadd.f32 0.0, %v429
      %v431 = vpop.f32.mrf.mxu0
      %v432 = vadd.f32 0.0, %v431
      %433 = vmatmul.bf16.gmra.mxu0 %v337
      %v434 = vpop.f32.mrf.mxu0
      %v435 = vadd.f32 0.0, %v434
      %v436 = vpop.f32.mrf.mxu0
      %v437 = vadd.f32 0.0, %v436
      %438 = vmatmul.bf16.gmra.mxu0 %v339
      %v439 = vpop.f32.mrf.mxu0
      %v440 = vadd.f32 0.0, %v439
      %v441 = vpop.f32.mrf.mxu0
      %v442 = vadd.f32 0.0, %v441
      %443 = vmatmul.bf16.gmra.mxu0 %v341
      %v444 = vpop.f32.mrf.mxu0
      %v445 = vadd.f32 0.0, %v444
      %v446 = vpop.f32.mrf.mxu0
      %v447 = vadd.f32 0.0, %v446
      %448 = vdwg.mxu0
      %449 = vmatpush.bf16.msra.mxu0 0
      %450 = vmatpush.bf16.msra.mxu0 0
      %451 = vmatpush.bf16.msra.mxu0 0
      %452 = vmatpush.bf16.msra.mxu0 0
      %453 = vmatpush.bf16.msra.mxu0 0
      %454 = vmatpush.bf16.msra.mxu0 0
      %455 = vmatpush.bf16.msra.mxu0 %v396
      %456 = vmatpush.bf16.msra.mxu0 %v395
      %457 = vmatmul.bf16.gmra.mxu0 %v409
      %v458 = vpop.f32.mrf.mxu0
      %v459 = vadd.f32 %v430, %v458
      %v460 = vpop.f32.mrf.mxu0
      %v461 = vadd.f32 %v432, %v460
      %462 = vmatmul.bf16.gmra.mxu0 %v412
      %v463 = vpop.f32.mrf.mxu0
      %v464 = vadd.f32 %v435, %v463
      %v465 = vpop.f32.mrf.mxu0
      %v466 = vadd.f32 %v437, %v465
      %467 = vmatmul.bf16.gmra.mxu0 %v415
      %v468 = vpop.f32.mrf.mxu0
      %v469 = vadd.f32 %v440, %v468
      %v470 = vpop.f32.mrf.mxu0
      %v471 = vadd.f32 %v442, %v470
      %472 = vmatmul.bf16.gmra.mxu0 %v418
      %v473 = vpop.f32.mrf.mxu0
      %v474 = vadd.f32 %v445, %v473
      %v475 = vpop.f32.mrf.mxu0
      %v476 = vadd.f32 %v447, %v475
      %477 = vdwg.mxu0
      %v478 = vpack.c.bf16 %v461, %v459
      %v479 = vpack.c.bf16 %v466, %v464
      %v480 = vpack.c.bf16 %v471, %v469
      %v481 = vpack.c.bf16 %v476, %v474
      %v482 = vld [vmem:[%s263] sm:$0xff]
      %v483 = vld [vmem:[%s263 + $0x8] sm:$0xf]
      %v484 = vld [vmem:[%s263 + $0xc] sm:$0xff]
      %v485 = vld [vmem:[%s263 + $0x14] sm:$0xf]
      %v486 = vld [vmem:[%s263 + $0x18] sm:$0xff]
      %v487 = vld [vmem:[%s263 + $0x20] sm:$0xf]
      %v488 = vld [vmem:[%s263 + $0x24] sm:$0xff]
      %v489 = vld [vmem:[%s263 + $0x2c] sm:$0xf]
      %v490 = vld [vmem:[%s263 + $0x30] sm:$0xff]
      %v491 = vld [vmem:[%s263 + $0x38] sm:$0xf]
      %v492 = vld [vmem:[%s263 + $0x3c] sm:$0xff]
      %v493 = vld [vmem:[%s263 + $0x44] sm:$0xf]
      %v494 = vld [vmem:[%s263 + $0x48] sm:$0xff]
      %v495 = vld [vmem:[%s263 + $0x50] sm:$0xf]
      %v496 = vld [vmem:[%s263 + $0x54] sm:$0xff]
      %v497 = vld [vmem:[%s263 + $0x5c] sm:$0xf]
      %v498 = vld [vmem:[%s263 + $0x60] sm:$0xff]
      %v499 = vld [vmem:[%s263 + $0x68] sm:$0xf]
      %v500 = vld [vmem:[%s263 + $0x6c] sm:$0xff]
      %v501 = vld [vmem:[%s263 + $0x74] sm:$0xf]
      %v502 = vld [vmem:[%s263 + $0x78] sm:$0xff]
      %v503 = vld [vmem:[%s263 + $0x80] sm:$0xf]
      %v504 = vld [vmem:[%s263 + $0x84] sm:$0xff]
      %v505 = vld [vmem:[%s263 + $0x8c] sm:$0xf]
      %v506 = vld [vmem:[%s263 + $0x90] sm:$0xff]
      %v507 = vld [vmem:[%s263 + $0x98] sm:$0xf]
      %v508 = vld [vmem:[%s263 + $0x9c] sm:$0xff]
      %v509 = vld [vmem:[%s263 + $0xa4] sm:$0xf]
      %v510 = vld [vmem:[%s263 + $0xa8] sm:$0xff]
      %v511 = vld [vmem:[%s263 + $0xb0] sm:$0xf]
      %v512 = vld [vmem:[%s263 + $0xb4] sm:$0xff]
      %v513 = vld [vmem:[%s263 + $0xbc] sm:$0xf]
      %v546 = vunpack.c.l.b16 %v482
      %v547 = vunpack.c.h.b16 %v482
      %v548 = vunpack.c.l.b16 %v483
      %v549 = vunpack.c.l.b16 %v484
      %v550 = vunpack.c.h.b16 %v484
      %v551 = vunpack.c.l.b16 %v485
      %v552 = vunpack.c.l.b16 %v486
      %v553 = vunpack.c.h.b16 %v486
      %v554 = vunpack.c.l.b16 %v487
      %v555 = vunpack.c.l.b16 %v488
      %v556 = vunpack.c.h.b16 %v488
      %v557 = vunpack.c.l.b16 %v489
      %v558 = vunpack.c.l.b16 %v490
      %v559 = vunpack.c.h.b16 %v490
      %v560 = vunpack.c.l.b16 %v491
      %v561 = vunpack.c.l.b16 %v492
      %v562 = vunpack.c.h.b16 %v492
      %v563 = vunpack.c.l.b16 %v493
      %v564 = vunpack.c.l.b16 %v494
      %v565 = vunpack.c.h.b16 %v494
      %v566 = vunpack.c.l.b16 %v495
      %v567 = vunpack.c.l.b16 %v496
      %v568 = vunpack.c.h.b16 %v496
      %v569 = vunpack.c.l.b16 %v497
      %v570 = vunpack.c.l.b16 %v498
      %v571 = vunpack.c.h.b16 %v498
      %v572 = vunpack.c.l.b16 %v499
      %v573 = vunpack.c.l.b16 %v500
      %v574 = vunpack.c.h.b16 %v500
      %v575 = vunpack.c.l.b16 %v501
      %v576 = vunpack.c.l.b16 %v502
      %v577 = vunpack.c.h.b16 %v502
      %v578 = vunpack.c.l.b16 %v503
      %v579 = vunpack.c.l.b16 %v504
      %v580 = vunpack.c.h.b16 %v504
      %v581 = vunpack.c.l.b16 %v505
      %v582 = vunpack.c.l.b16 %v506
      %v583 = vunpack.c.h.b16 %v506
      %v584 = vunpack.c.l.b16 %v507
      %v585 = vunpack.c.l.b16 %v508
      %v586 = vunpack.c.h.b16 %v508
      %v587 = vunpack.c.l.b16 %v509
      %v588 = vunpack.c.l.b16 %v510
      %v589 = vunpack.c.h.b16 %v510
      %v590 = vunpack.c.l.b16 %v511
      %v591 = vunpack.c.l.b16 %v512
      %v592 = vunpack.c.h.b16 %v512
      %v593 = vunpack.c.l.b16 %v513
      %v594 = vpack.c.b16 %v549, %v546
      %v595 = vpack.c.b16 %v550, %v547
      %v596 = vpack.c.b16 %v551, %v548
      %v597 = vpack.c.b16 %v555, %v552
      %v598 = vpack.c.b16 %v556, %v553
      %v599 = vpack.c.b16 %v557, %v554
      %v600 = vpack.c.b16 %v561, %v558
      %v601 = vpack.c.b16 %v562, %v559
      %v602 = vpack.c.b16 %v563, %v560
      %v603 = vpack.c.b16 %v567, %v564
      %v604 = vpack.c.b16 %v568, %v565
      %v605 = vpack.c.b16 %v569, %v566
      %v606 = vpack.c.b16 %v573, %v570
      %v607 = vpack.c.b16 %v574, %v571
      %v608 = vpack.c.b16 %v575, %v572
      %v609 = vpack.c.b16 %v579, %v576
      %v610 = vpack.c.b16 %v580, %v577
      %v611 = vpack.c.b16 %v581, %v578
      %v612 = vpack.c.b16 %v585, %v582
      %v613 = vpack.c.b16 %v586, %v583
      %v614 = vpack.c.b16 %v587, %v584
      %v615 = vpack.c.b16 %v591, %v588
      %v616 = vpack.c.b16 %v592, %v589
      %v617 = vpack.c.b16 %v593, %v590
      %642 = vmatpush.bf16.msra.mxu0 %v615
      %643 = vmatpush.bf16.msra.mxu0 %v612
      %644 = vmatpush.bf16.msra.mxu0 %v609
      %645 = vmatpush.bf16.msra.mxu0 %v606
      %646 = vmatpush.bf16.msra.mxu0 %v603
      %647 = vmatpush.bf16.msra.mxu0 %v600
      %648 = vmatpush.bf16.msra.mxu0 %v597
      %649 = vmatpush.bf16.msra.mxu0 %v594
      %650 = vmatmul.bf16.gmra.mxu0 %v478
      %v651 = vpop.f32.mrf.mxu0
      %v652 = vadd.f32 0.0, %v651
      %v653 = vpop.f32.mrf.mxu0
      %v654 = vadd.f32 0.0, %v653
      %655 = vmatmul.bf16.gmra.mxu0 %v479
      %v656 = vpop.f32.mrf.mxu0
      %v657 = vadd.f32 0.0, %v656
      %v658 = vpop.f32.mrf.mxu0
      %v659 = vadd.f32 0.0, %v658
      %660 = vmatmul.bf16.gmra.mxu0 %v480
      %v661 = vpop.f32.mrf.mxu0
      %v662 = vadd.f32 0.0, %v661
      %v663 = vpop.f32.mrf.mxu0
      %v664 = vadd.f32 0.0, %v663
      %665 = vmatmul.bf16.gmra.mxu0 %v481
      %v666 = vpop.f32.mrf.mxu0
      %v667 = vadd.f32 0.0, %v666
      %v668 = vpop.f32.mrf.mxu0
      %v669 = vadd.f32 0.0, %v668
      %670 = vdwg.mxu0
      %671 = vmatpush.bf16.msra.mxu0 %v616
      %672 = vmatpush.bf16.msra.mxu0 %v613
      %673 = vmatpush.bf16.msra.mxu0 %v610
      %674 = vmatpush.bf16.msra.mxu0 %v607
      %675 = vmatpush.bf16.msra.mxu0 %v604
      %676 = vmatpush.bf16.msra.mxu0 %v601
      %677 = vmatpush.bf16.msra.mxu0 %v598
      %678 = vmatpush.bf16.msra.mxu0 %v595
      %679 = vmatmul.bf16.gmra.mxu0 %v478
      %v680 = vpop.f32.mrf.mxu0
      %v681 = vadd.f32 0.0, %v680
      %v682 = vpop.f32.mrf.mxu0
      %v683 = vadd.f32 0.0, %v682
      %684 = vmatmul.bf16.gmra.mxu0 %v479
      %v685 = vpop.f32.mrf.mxu0
      %v686 = vadd.f32 0.0, %v685
      %v687 = vpop.f32.mrf.mxu0
      %v688 = vadd.f32 0.0, %v687
      %689 = vmatmul.bf16.gmra.mxu0 %v480
      %v690 = vpop.f32.mrf.mxu0
      %v691 = vadd.f32 0.0, %v690
      %v692 = vpop.f32.mrf.mxu0
      %v693 = vadd.f32 0.0, %v692
      %694 = vmatmul.bf16.gmra.mxu0 %v481
      %v695 = vpop.f32.mrf.mxu0
      %v696 = vadd.f32 0.0, %v695
      %v697 = vpop.f32.mrf.mxu0
      %v698 = vadd.f32 0.0, %v697
      %699 = vdwg.mxu0
      %700 = vmatpush.bf16.msra.mxu0 %v617
      %701 = vmatpush.bf16.msra.mxu0 %v614
      %702 = vmatpush.bf16.msra.mxu0 %v611
      %703 = vmatpush.bf16.msra.mxu0 %v608
      %704 = vmatpush.bf16.msra.mxu0 %v605
      %705 = vmatpush.bf16.msra.mxu0 %v602
      %706 = vmatpush.bf16.msra.mxu0 %v599
      %707 = vmatpush.bf16.msra.mxu0 %v596
      %708 = vmatmul.bf16.gmra.mxu0 %v478
      %v709 = vpop.f32.mrf.mxu0
      %v710 = vadd.f32 0.0, %v709
      %v711 = vpop.f32.mrf.mxu0
      %v712 = vadd.f32 0.0, %v711
      %713 = vmatmul.bf16.gmra.mxu0 %v479
      %v714 = vpop.f32.mrf.mxu0
      %v715 = vadd.f32 0.0, %v714
      %v716 = vpop.f32.mrf.mxu0
      %v717 = vadd.f32 0.0, %v716
      %718 = vmatmul.bf16.gmra.mxu0 %v480
      %v719 = vpop.f32.mrf.mxu0
      %v720 = vadd.f32 0.0, %v719
      %v721 = vpop.f32.mrf.mxu0
      %v722 = vadd.f32 0.0, %v721
      %723 = vmatmul.bf16.gmra.mxu0 %v481
      %v724 = vpop.f32.mrf.mxu0
      %v725 = vadd.f32 0.0, %v724
      %v726 = vpop.f32.mrf.mxu0
      %v727 = vadd.f32 0.0, %v726
      %728 = vdwg.mxu0
      %v729 = vmax.f32 %v652, 0.0
      %v730 = vmax.f32 %v681, 0.0
      %v731 = vmax.f32 %v710, 0.0
      %v732 = vmax.f32 %v654, 0.0
      %v733 = vmax.f32 %v683, 0.0
      %v734 = vmax.f32 %v712, 0.0
      %v735 = vmax.f32 %v657, 0.0
      %v736 = vmax.f32 %v686, 0.0
      %v737 = vmax.f32 %v715, 0.0
      %v738 = vmax.f32 %v659, 0.0
      %v739 = vmax.f32 %v688, 0.0
      %v740 = vmax.f32 %v717, 0.0
      %v741 = vmax.f32 %v662, 0.0
      %v742 = vmax.f32 %v691, 0.0
      %v743 = vmax.f32 %v720, 0.0
      %v744 = vmax.f32 %v664, 0.0
      %v745 = vmax.f32 %v693, 0.0
      %v746 = vmax.f32 %v722, 0.0
      %v747 = vmax.f32 %v667, 0.0
      %v748 = vmax.f32 %v696, 0.0
      %v749 = vmax.f32 %v725, 0.0
      %v750 = vmax.f32 %v669, 0.0
      %v751 = vmax.f32 %v698, 0.0
      %v752 = vmax.f32 %v727, 0.0
      %v753 = vld [vmem:[#allocation2] sm:$0x7]
      %v754 = vadd.f32 %v729, %v732
      %v755 = vadd.f32 %v754, %v735
      %v756 = vadd.f32 %v755, %v738
      %v757 = vadd.f32 %v756, %v741
      %v758 = vadd.f32 %v757, %v744
      %v759 = vadd.f32 %v758, %v747
      %v760 = vadd.f32 %v759, %v750
      %v761 = vrot.slane %v760, 4
      %v762 = vadd.f32 %v760, %v761
      %v763 = vrot.slane %v762, 2
      %v764 = vadd.f32 %v762, %v763
      %v765 = vrot.slane %v764, 1
      %v766 = vadd.f32 %v764, %v765
      %v767 = vadd.f32 %v730, %v733
      %v768 = vadd.f32 %v767, %v736
      %v769 = vadd.f32 %v768, %v739
      %v770 = vadd.f32 %v769, %v742
      %v771 = vadd.f32 %v770, %v745
      %v772 = vadd.f32 %v771, %v748
      %v773 = vadd.f32 %v772, %v751
      %v774 = vrot.slane %v773, 4
      %v775 = vadd.f32 %v773, %v774
      %v776 = vrot.slane %v775, 2
      %v777 = vadd.f32 %v775, %v776
      %v778 = vrot.slane %v777, 1
      %v779 = vadd.f32 %v777, %v778
      %v780 = vadd.f32 %v731, %v734
      %v781 = vadd.f32 %v780, %v737
      %v782 = vadd.f32 %v781, %v740
      %v783 = vadd.f32 %v782, %v743
      %v784 = vadd.f32 %v783, %v746
      %v785 = vadd.f32 %v784, %v749
      %v786 = vadd.f32 %v785, %v752
      %v787 = vrot.slane %v786, 4
      %v788 = vadd.f32 %v786, %v787
      %v789 = vrot.slane %v788, 2
      %v790 = vadd.f32 %v788, %v789
      %v791 = vrot.slane %v790, 1
      %v792 = vadd.f32 %v790, %v791
      %v796 = vrot.slane %v779, 7
      %v797 = vrot.slane %v792, 6
      %vm798 = vcmask 1040384
      %v799 = vsel %vm798, %v766, %v796
      %vm800 = vcmask 1041408
      %v801 = vsel %vm800, %v799, %v797
      %v803 = vadd.f32 %v753, %v801
      %v804 = vlaneseq
      %vm805 = vcmp.ge.s32.totalorder %v804, 0
      %vm806 = vcmp.lt.s32.totalorder %v804, 384
      %vm807 = vmand %vm805, %vm806
      %808 = vst.msk [vmem:[#allocation2] sm:$0x7] %vm807, %v803
      // Predicated region
      $region37: #{rgbdmh_forward.2} parent=31 // pred_check
        %p809 = pneg %p274
      $region38: #{rgbdmh_forward.2} parent=31 // pred_check_branch
        %811 = sbr.rel (%p809) target = $region40
      $region39: #{rgbdmh_forward.2} parent=31 // pred_region
        %v812 = vld [vmem:[#allocation2] sm:$0x7]
        %v813 = vmul.f32 %v812, 0.015625
        %v814 = vsub.f32 0.0, %v813
        %v815 = vmul.f32 %v814, 1.442695
        %v816 = vpow.pop %v815
        %v817 = vadd.f32 %v816, 1.0
        %v818 = vrcp.pop %v817
        %v819 = vmul.f32 %v817, %v818
        %v820 = vsub.f32 1.0, %v819
        %v821 = vmul.f32 %v818, %v820
        %v822 = vadd.f32 %v818, %v821
        %vm823 = vweird.f32 %v817
        %vm824 = vweird.f32 %v818
        %vm825 = vmor %vm823, %vm824
        %v826 = vsel %vm825, %v818, %v822
        %v827 = vand.u32 2147483647, %v817
        %vm828 = vcmp.eq.f32.partialorder %v827, 8.507059e+37
        %v829 = vand.u32 %v817, 2147483648
        %v830 = vor.u32 1.1754944e-38, %v829
        %v831 = vsel %vm828, %v830, %v826
        %v832 = vmul.f32 1.0, %v831
        %v834 = vperm.slane %v832, 0
        %v835 = vperm.slane %v832, 1
        %v836 = vperm.slane %v832, 2
        %840 = vst [vmem:[%s272] sm:$0xff] %v834
        %841 = vst [vmem:[%s272 + $0x8] sm:$0xff] %v835
        %842 = vst [vmem:[%s272 + $0x10] sm:$0xff] %v836
      $region40: #{rgbdmh_forward.2} parent=31 // pred_fallthru
        _
      %p843 = scmp.lt.s32.totalorder %s19, 1
      %s844 = scalar_select %p843, %s19, 1
      %p845 = scmp.lt.s32.totalorder %s20, 1
      %s846 = scalar_select %p845, %s20, 1
      %s847 = smul.addr %s846, 3
      %s848 = smul.addr %s844, 6
      %s849 = sadd.s32 %s847, %s848
      %s850 = smul.addr %s849, 8
      %s851 = scalar_lea.vmem %s3, %s850
      // Predicated region
      $region41: #{rgbdmh_forward.2} parent=31 // pred_check
        %p852 = pneg %p135
      $region42: #{rgbdmh_forward.2} parent=31 // pred_check_branch
        %854 = sbr.rel (%p852) target = $region44
      $region43: #{rgbdmh_forward.2} parent=31 // pred_region
        _
      $region44: #{rgbdmh_forward.2} parent=31 // pred_fallthru
        _
    $region32: #{rgbdmh_forward.2} parent=5 // pred_fallthru
      _
    %p855 = scmp.le.s32.totalorder 2, %s9
    // Predicated region
    $region45: #{rgbdmh_forward.2} parent=5 // pred_check
      %p856 = pneg %p855
    $region46: #{rgbdmh_forward.2} parent=5 // pred_check_branch
      %858 = sbr.rel (%p856) target = $region48
    $region47: #{rgbdmh_forward.2} parent=5 // pred_region
      %s859 = ssub.s32 %s9, 2
      // Predicated region
      $region49: #{rgbdmh_forward.2} parent=47 // pred_check
        %p860 = pneg %p141
      $region50: #{rgbdmh_forward.2} parent=47 // pred_check_branch
        %862 = sbr.rel (%p860) target = $region52
      $region51: #{rgbdmh_forward.2} parent=47 // pred_region
        %p863 = scmp.lt.s32.totalorder %s22, 1
        %s864 = scalar_select %p863, %s22, 1
        %p865 = scmp.lt.s32.totalorder %s23, 1
        %s866 = scalar_select %p865, %s23, 1
        %s867 = smul.addr %s866, 3
        %s868 = smul.addr %s864, 6
        %s869 = sadd.s32 %s867, %s868
        %s870 = smul.addr %s869, 8
        %s871 = scalar_lea.vmem %s3, %s870
      $region52: #{rgbdmh_forward.2} parent=47 // pred_fallthru
        _
    $region48: #{rgbdmh_forward.2} parent=5 // pred_fallthru
      _
  $region6: #{rgbdmh_forward.2} parent=0 // loop_footer
    %s13 = sadd.s32 1, %s9
  $region7: #{rgbdmh_forward.2} parent=0 // loop_footer_branch
    %8 = sbr.rel target = $region3
  $region8: #{rgbdmh_forward.2} parent=0 // loop_exit
    _

// kernel: rgbdmh_forward.3
$region0: #{rgbdmh_forward.3}
  #allocation0 [shape = 'u32[]', space=smem, size = 0x4, offset = 0x4, fixed_abs, tag = 'smem constant byte address 0x4 - core index']
  #allocation1 [shape = 'u32[72,128]{1,0:T(1,128)}', space=vmem, size = 0x9000, scoped, tag = 'internal scratch']
  %s0 = inlined_call_operand.vmem [shape: f32[2,384], index: 0, kind: input, shape index: {}]
  %s1 = inlined_call_operand.vmem [shape: f32[2,384], index: 1, kind: input, shape index: {}]
  %s2 = inlined_call_operand.vmem [shape: bf16[384,512], index: 2, kind: input, shape index: {}]
  %s3 = inlined_call_operand.vmem [shape: bf16[384,512], index: 3, kind: input, shape index: {}]
  %s4 = inlined_call_operand.vmem [shape: f32[1,512], index: 4, kind: input, shape index: {}]
  %s5 = inlined_call_operand.vmem [shape: bf16[384,128], index: 5, kind: input, shape index: {}]
  %s6 = inlined_call_operand.vmem [shape: f32[1,128], index: 6, kind: input, shape index: {}]
  %s7 = inlined_call_operand.hbm [shape: f32[2,768], index: 7, kind: output, shape index: {0}]
  %s8 = inlined_call_operand.vmem [shape: f32[2,128], index: 8, kind: output, shape index: {1}]
  %9 = xla_tuple %s7, %s8
  %s10 = sld [smem:[#allocation0]]
  $region46: #{rgbdmh_forward.3} parent=0
    _
  %s12 = ssub.s32 1, %s10
  %s13 = scalar_select 0, %s12, %s10
  $region1: #{rgbdmh_forward.3} parent=0
    #allocation2 [shape = 'u8[6144]{0}', space=vmem, size = 0x1800, scoped, tag = 'output window, operand 0, single buffered']
    #allocation3 [shape = 's32[1]{0}', space=sflag, size = 0x4, scoped, tag = 'scoped memory for rgbdmh_forward.3']
    %14 = vsyncpa [#allocation3], 0
    // Predicated region
    $region2: #{rgbdmh_forward.3} parent=1 // pred_check
      _
    $region3: #{rgbdmh_forward.3} parent=1 // pred_check_branch
      %16 = sbr.rel (0) target = $region5
    $region4: #{rgbdmh_forward.3} parent=1 // pred_region
      _
    $region5: #{rgbdmh_forward.3} parent=1 // pred_fallthru
      _
    // Predicated region
    $region6: #{rgbdmh_forward.3} parent=1 // pred_check
      _
    $region7: #{rgbdmh_forward.3} parent=1 // pred_check_branch
      %18 = sbr.rel (0) target = $region9
    $region8: #{rgbdmh_forward.3} parent=1 // pred_region
      _
    $region9: #{rgbdmh_forward.3} parent=1 // pred_fallthru
      _
    // Predicated region
    $region10: #{rgbdmh_forward.3} parent=1 // pred_check
      _
    $region11: #{rgbdmh_forward.3} parent=1 // pred_check_branch
      %20 = sbr.rel (0) target = $region13
    $region12: #{rgbdmh_forward.3} parent=1 // pred_region
      _
    $region13: #{rgbdmh_forward.3} parent=1 // pred_fallthru
      _
    // Predicated region
    $region14: #{rgbdmh_forward.3} parent=1 // pred_check
      _
    $region15: #{rgbdmh_forward.3} parent=1 // pred_check_branch
      %22 = sbr.rel (0) target = $region17
    $region16: #{rgbdmh_forward.3} parent=1 // pred_region
      _
    $region17: #{rgbdmh_forward.3} parent=1 // pred_fallthru
      _
    // Predicated region
    $region18: #{rgbdmh_forward.3} parent=1 // pred_check
      _
    $region19: #{rgbdmh_forward.3} parent=1 // pred_check_branch
      %24 = sbr.rel (0) target = $region21
    $region20: #{rgbdmh_forward.3} parent=1 // pred_region
      _
    $region21: #{rgbdmh_forward.3} parent=1 // pred_fallthru
      _
    // Predicated region
    $region22: #{rgbdmh_forward.3} parent=1 // pred_check
      _
    $region23: #{rgbdmh_forward.3} parent=1 // pred_check_branch
      %26 = sbr.rel (0) target = $region25
    $region24: #{rgbdmh_forward.3} parent=1 // pred_region
      _
    $region25: #{rgbdmh_forward.3} parent=1 // pred_fallthru
      _
    // Predicated region
    $region26: #{rgbdmh_forward.3} parent=1 // pred_check
      _
    $region27: #{rgbdmh_forward.3} parent=1 // pred_check_branch
      %28 = sbr.rel (0) target = $region29
    $region28: #{rgbdmh_forward.3} parent=1 // pred_region
      _
    $region29: #{rgbdmh_forward.3} parent=1 // pred_fallthru
      _
    %v29 = vld [vmem:[%s0] sm:$0x3f]
    %v30 = vld [vmem:[%s1] sm:$0x3f]
    %31 = vst [vmem:[#allocation2] sm:$0x3f] %v29
    %32 = vst [vmem:[#allocation2 + $0x6] sm:$0x3f] %v30
    %34 = vst [vmem:[#allocation1] ss:$4 sm:$0xff] %v29
    %v35 = vld.sshfl [vmem:[#allocation1] sm:$0xff pattern:$0x73625140]
    %v36 = vld.sshfl [vmem:[#allocation1 + $0x8] sm:$0xff pattern:$0x73625140]
    %v37 = vld.sshfl [vmem:[#allocation1 + $0x10] sm:$0xff pattern:$0x73625140]
    %v41 = vpack.c.bf16 %v35, %v35
    %v42 = vpack.c.bf16 %v36, %v36
    %v43 = vpack.c.bf16 %v37, %v37
    %v44 = vld [vmem:[%s2] sm:$0xff]
    %v45 = vld [vmem:[%s2 + $0x8] sm:$0xff]
    %v46 = vld [vmem:[%s2 + $0x10] sm:$0xff]
    %v47 = vld [vmem:[%s2 + $0x18] sm:$0xff]
    %v48 = vld [vmem:[%s2 + $0x20] sm:$0xff]
    %v49 = vld [vmem:[%s2 + $0x28] sm:$0xff]
    %v50 = vld [vmem:[%s2 + $0x30] sm:$0xff]
    %v51 = vld [vmem:[%s2 + $0x38] sm:$0xff]
    %v52 = vld [vmem:[%s2 + $0x40] sm:$0xff]
    %v53 = vld [vmem:[%s2 + $0x48] sm:$0xff]
    %v54 = vld [vmem:[%s2 + $0x50] sm:$0xff]
    %v55 = vld [vmem:[%s2 + $0x58] sm:$0xff]
    %v56 = vld [vmem:[%s2 + $0x60] sm:$0xff]
    %v57 = vld [vmem:[%s2 + $0x68] sm:$0xff]
    %v58 = vld [vmem:[%s2 + $0x70] sm:$0xff]
    %v59 = vld [vmem:[%s2 + $0x78] sm:$0xff]
    %v60 = vld [vmem:[%s2 + $0x80] sm:$0xff]
    %v61 = vld [vmem:[%s2 + $0x88] sm:$0xff]
    %v62 = vld [vmem:[%s2 + $0x90] sm:$0xff]
    %v63 = vld [vmem:[%s2 + $0x98] sm:$0xff]
    %v64 = vld [vmem:[%s2 + $0xa0] sm:$0xff]
    %v65 = vld [vmem:[%s2 + $0xa8] sm:$0xff]
    %v66 = vld [vmem:[%s2 + $0xb0] sm:$0xff]
    %v67 = vld [vmem:[%s2 + $0xb8] sm:$0xff]
    %v68 = vld [vmem:[%s2 + $0xc0] sm:$0xff]
    %v69 = vld [vmem:[%s2 + $0xc8] sm:$0xff]
    %v70 = vld [vmem:[%s2 + $0xd0] sm:$0xff]
    %v71 = vld [vmem:[%s2 + $0xd8] sm:$0xff]
    %v72 = vld [vmem:[%s2 + $0xe0] sm:$0xff]
    %v73 = vld [vmem:[%s2 + $0xe8] sm:$0xff]
    %v74 = vld [vmem:[%s2 + $0xf0] sm:$0xff]
    %v75 = vld [vmem:[%s2 + $0xf8] sm:$0xff]
    %v76 = vld [vmem:[%s2 + $0x100] sm:$0xff]
    %v77 = vld [vmem:[%s2 + $0x108] sm:$0xff]
    %v78 = vld [vmem:[%s2 + $0x110] sm:$0xff]
    %v79 = vld [vmem:[%s2 + $0x118] sm:$0xff]
    %v80 = vld [vmem:[%s2 + $0x120] sm:$0xff]
    %v81 = vld [vmem:[%s2 + $0x128] sm:$0xff]
    %v82 = vld [vmem:[%s2 + $0x130] sm:$0xff]
    %v83 = vld [vmem:[%s2 + $0x138] sm:$0xff]
    %v84 = vld [vmem:[%s2 + $0x140] sm:$0xff]
    %v85 = vld [vmem:[%s2 + $0x148] sm:$0xff]
    %v86 = vld [vmem:[%s2 + $0x150] sm:$0xff]
    %v87 = vld [vmem:[%s2 + $0x158] sm:$0xff]
    %v88 = vld [vmem:[%s2 + $0x160] sm:$0xff]
    %v89 = vld [vmem:[%s2 + $0x168] sm:$0xff]
    %v90 = vld [vmem:[%s2 + $0x170] sm:$0xff]
    %v91 = vld [vmem:[%s2 + $0x178] sm:$0xff]
    %v92 = vld [vmem:[%s2 + $0x180] sm:$0xff]
    %v93 = vld [vmem:[%s2 + $0x188] sm:$0xff]
    %v94 = vld [vmem:[%s2 + $0x190] sm:$0xff]
    %v95 = vld [vmem:[%s2 + $0x198] sm:$0xff]
    %v96 = vld [vmem:[%s2 + $0x1a0] sm:$0xff]
    %v97 = vld [vmem:[%s2 + $0x1a8] sm:$0xff]
    %v98 = vld [vmem:[%s2 + $0x1b0] sm:$0xff]
    %v99 = vld [vmem:[%s2 + $0x1b8] sm:$0xff]
    %v100 = vld [vmem:[%s2 + $0x1c0] sm:$0xff]
    %v101 = vld [vmem:[%s2 + $0x1c8] sm:$0xff]
    %v102 = vld [vmem:[%s2 + $0x1d0] sm:$0xff]
    %v103 = vld [vmem:[%s2 + $0x1d8] sm:$0xff]
    %v104 = vld [vmem:[%s2 + $0x1e0] sm:$0xff]
    %v105 = vld [vmem:[%s2 + $0x1e8] sm:$0xff]
    %v106 = vld [vmem:[%s2 + $0x1f0] sm:$0xff]
    %v107 = vld [vmem:[%s2 + $0x1f8] sm:$0xff]
    %v108 = vld [vmem:[%s2 + $0x200] sm:$0xff]
    %v109 = vld [vmem:[%s2 + $0x208] sm:$0xff]
    %v110 = vld [vmem:[%s2 + $0x210] sm:$0xff]
    %v111 = vld [vmem:[%s2 + $0x218] sm:$0xff]
    %v112 = vld [vmem:[%s2 + $0x220] sm:$0xff]
    %v113 = vld [vmem:[%s2 + $0x228] sm:$0xff]
    %v114 = vld [vmem:[%s2 + $0x230] sm:$0xff]
    %v115 = vld [vmem:[%s2 + $0x238] sm:$0xff]
    %v116 = vld [vmem:[%s2 + $0x240] sm:$0xff]
    %v117 = vld [vmem:[%s2 + $0x248] sm:$0xff]
    %v118 = vld [vmem:[%s2 + $0x250] sm:$0xff]
    %v119 = vld [vmem:[%s2 + $0x258] sm:$0xff]
    %v120 = vld [vmem:[%s2 + $0x260] sm:$0xff]
    %v121 = vld [vmem:[%s2 + $0x268] sm:$0xff]
    %v122 = vld [vmem:[%s2 + $0x270] sm:$0xff]
    %v123 = vld [vmem:[%s2 + $0x278] sm:$0xff]
    %v124 = vld [vmem:[%s2 + $0x280] sm:$0xff]
    %v125 = vld [vmem:[%s2 + $0x288] sm:$0xff]
    %v126 = vld [vmem:[%s2 + $0x290] sm:$0xff]
    %v127 = vld [vmem:[%s2 + $0x298] sm:$0xff]
    %v128 = vld [vmem:[%s2 + $0x2a0] sm:$0xff]
    %v129 = vld [vmem:[%s2 + $0x2a8] sm:$0xff]
    %v130 = vld [vmem:[%s2 + $0x2b0] sm:$0xff]
    %v131 = vld [vmem:[%s2 + $0x2b8] sm:$0xff]
    %v132 = vld [vmem:[%s2 + $0x2c0] sm:$0xff]
    %v133 = vld [vmem:[%s2 + $0x2c8] sm:$0xff]
    %v134 = vld [vmem:[%s2 + $0x2d0] sm:$0xff]
    %v135 = vld [vmem:[%s2 + $0x2d8] sm:$0xff]
    %v136 = vld [vmem:[%s2 + $0x2e0] sm:$0xff]
    %v137 = vld [vmem:[%s2 + $0x2e8] sm:$0xff]
    %v138 = vld [vmem:[%s2 + $0x2f0] sm:$0xff]
    %v139 = vld [vmem:[%s2 + $0x2f8] sm:$0xff]
    %141 = vst [vmem:[#allocation1] ss:$4 sm:$0xff] %v30
    %v142 = vld.sshfl [vmem:[#allocation1] sm:$0xff pattern:$0x73625140]
    %v143 = vld.sshfl [vmem:[#allocation1 + $0x8] sm:$0xff pattern:$0x73625140]
    %v144 = vld.sshfl [vmem:[#allocation1 + $0x10] sm:$0xff pattern:$0x73625140]
    %v148 = vpack.c.bf16 %v142, %v142
    %v149 = vpack.c.bf16 %v143, %v143
    %v150 = vpack.c.bf16 %v144, %v144
    %v151 = vld [vmem:[%s3] sm:$0xff]
    %v152 = vld [vmem:[%s3 + $0x8] sm:$0xff]
    %v153 = vld [vmem:[%s3 + $0x10] sm:$0xff]
    %v154 = vld [vmem:[%s3 + $0x18] sm:$0xff]
    %v155 = vld [vmem:[%s3 + $0x20] sm:$0xff]
    %v156 = vld [vmem:[%s3 + $0x28] sm:$0xff]
    %v157 = vld [vmem:[%s3 + $0x30] sm:$0xff]
    %v158 = vld [vmem:[%s3 + $0x38] sm:$0xff]
    %v159 = vld [vmem:[%s3 + $0x40] sm:$0xff]
    %v160 = vld [vmem:[%s3 + $0x48] sm:$0xff]
    %v161 = vld [vmem:[%s3 + $0x50] sm:$0xff]
    %v162 = vld [vmem:[%s3 + $0x58] sm:$0xff]
    %v163 = vld [vmem:[%s3 + $0x60] sm:$0xff]
    %v164 = vld [vmem:[%s3 + $0x68] sm:$0xff]
    %v165 = vld [vmem:[%s3 + $0x70] sm:$0xff]
    %v166 = vld [vmem:[%s3 + $0x78] sm:$0xff]
    %v167 = vld [vmem:[%s3 + $0x80] sm:$0xff]
    %v168 = vld [vmem:[%s3 + $0x88] sm:$0xff]
    %v169 = vld [vmem:[%s3 + $0x90] sm:$0xff]
    %v170 = vld [vmem:[%s3 + $0x98] sm:$0xff]
    %v171 = vld [vmem:[%s3 + $0xa0] sm:$0xff]
    %v172 = vld [vmem:[%s3 + $0xa8] sm:$0xff]
    %v173 = vld [vmem:[%s3 + $0xb0] sm:$0xff]
    %v174 = vld [vmem:[%s3 + $0xb8] sm:$0xff]
    %v175 = vld [vmem:[%s3 + $0xc0] sm:$0xff]
    %v176 = vld [vmem:[%s3 + $0xc8] sm:$0xff]
    %v177 = vld [vmem:[%s3 + $0xd0] sm:$0xff]
    %v178 = vld [vmem:[%s3 + $0xd8] sm:$0xff]
    %v179 = vld [vmem:[%s3 + $0xe0] sm:$0xff]
    %v180 = vld [vmem:[%s3 + $0xe8] sm:$0xff]
    %v181 = vld [vmem:[%s3 + $0xf0] sm:$0xff]
    %v182 = vld [vmem:[%s3 + $0xf8] sm:$0xff]
    %v183 = vld [vmem:[%s3 + $0x100] sm:$0xff]
    %v184 = vld [vmem:[%s3 + $0x108] sm:$0xff]
    %v185 = vld [vmem:[%s3 + $0x110] sm:$0xff]
    %v186 = vld [vmem:[%s3 + $0x118] sm:$0xff]
    %v187 = vld [vmem:[%s3 + $0x120] sm:$0xff]
    %v188 = vld [vmem:[%s3 + $0x128] sm:$0xff]
    %v189 = vld [vmem:[%s3 + $0x130] sm:$0xff]
    %v190 = vld [vmem:[%s3 + $0x138] sm:$0xff]
    %v191 = vld [vmem:[%s3 + $0x140] sm:$0xff]
    %v192 = vld [vmem:[%s3 + $0x148] sm:$0xff]
    %v193 = vld [vmem:[%s3 + $0x150] sm:$0xff]
    %v194 = vld [vmem:[%s3 + $0x158] sm:$0xff]
    %v195 = vld [vmem:[%s3 + $0x160] sm:$0xff]
    %v196 = vld [vmem:[%s3 + $0x168] sm:$0xff]
    %v197 = vld [vmem:[%s3 + $0x170] sm:$0xff]
    %v198 = vld [vmem:[%s3 + $0x178] sm:$0xff]
    %v199 = vld [vmem:[%s3 + $0x180] sm:$0xff]
    %v200 = vld [vmem:[%s3 + $0x188] sm:$0xff]
    %v201 = vld [vmem:[%s3 + $0x190] sm:$0xff]
    %v202 = vld [vmem:[%s3 + $0x198] sm:$0xff]
    %v203 = vld [vmem:[%s3 + $0x1a0] sm:$0xff]
    %v204 = vld [vmem:[%s3 + $0x1a8] sm:$0xff]
    %v205 = vld [vmem:[%s3 + $0x1b0] sm:$0xff]
    %v206 = vld [vmem:[%s3 + $0x1b8] sm:$0xff]
    %v207 = vld [vmem:[%s3 + $0x1c0] sm:$0xff]
    %v208 = vld [vmem:[%s3 + $0x1c8] sm:$0xff]
    %v209 = vld [vmem:[%s3 + $0x1d0] sm:$0xff]
    %v210 = vld [vmem:[%s3 + $0x1d8] sm:$0xff]
    %v211 = vld [vmem:[%s3 + $0x1e0] sm:$0xff]
    %v212 = vld [vmem:[%s3 + $0x1e8] sm:$0xff]
    %v213 = vld [vmem:[%s3 + $0x1f0] sm:$0xff]
    %v214 = vld [vmem:[%s3 + $0x1f8] sm:$0xff]
    %v215 = vld [vmem:[%s3 + $0x200] sm:$0xff]
    %v216 = vld [vmem:[%s3 + $0x208] sm:$0xff]
    %v217 = vld [vmem:[%s3 + $0x210] sm:$0xff]
    %v218 = vld [vmem:[%s3 + $0x218] sm:$0xff]
    %v219 = vld [vmem:[%s3 + $0x220] sm:$0xff]
    %v220 = vld [vmem:[%s3 + $0x228] sm:$0xff]
    %v221 = vld [vmem:[%s3 + $0x230] sm:$0xff]
    %v222 = vld [vmem:[%s3 + $0x238] sm:$0xff]
    %v223 = vld [vmem:[%s3 + $0x240] sm:$0xff]
    %v224 = vld [vmem:[%s3 + $0x248] sm:$0xff]
    %v225 = vld [vmem:[%s3 + $0x250] sm:$0xff]
    %v226 = vld [vmem:[%s3 + $0x258] sm:$0xff]
    %v227 = vld [vmem:[%s3 + $0x260] sm:$0xff]
    %v228 = vld [vmem:[%s3 + $0x268] sm:$0xff]
    %v229 = vld [vmem:[%s3 + $0x270] sm:$0xff]
    %v230 = vld [vmem:[%s3 + $0x278] sm:$0xff]
    %v231 = vld [vmem:[%s3 + $0x280] sm:$0xff]
    %v232 = vld [vmem:[%s3 + $0x288] sm:$0xff]
    %v233 = vld [vmem:[%s3 + $0x290] sm:$0xff]
    %v234 = vld [vmem:[%s3 + $0x298] sm:$0xff]
    %v235 = vld [vmem:[%s3 + $0x2a0] sm:$0xff]
    %v236 = vld [vmem:[%s3 + $0x2a8] sm:$0xff]
    %v237 = vld [vmem:[%s3 + $0x2b0] sm:$0xff]
    %v238 = vld [vmem:[%s3 + $0x2b8] sm:$0xff]
    %v239 = vld [vmem:[%s3 + $0x2c0] sm:$0xff]
    %v240 = vld [vmem:[%s3 + $0x2c8] sm:$0xff]
    %v241 = vld [vmem:[%s3 + $0x2d0] sm:$0xff]
    %v242 = vld [vmem:[%s3 + $0x2d8] sm:$0xff]
    %v243 = vld [vmem:[%s3 + $0x2e0] sm:$0xff]
    %v244 = vld [vmem:[%s3 + $0x2e8] sm:$0xff]
    %v245 = vld [vmem:[%s3 + $0x2f0] sm:$0xff]
    %v246 = vld [vmem:[%s3 + $0x2f8] sm:$0xff]
    %v343 = vunpack.c.l.b16 %v151
    %v344 = vunpack.c.h.b16 %v151
    %v345 = vunpack.c.l.b16 %v152
    %v346 = vunpack.c.h.b16 %v152
    %v347 = vunpack.c.l.b16 %v153
    %v348 = vunpack.c.h.b16 %v153
    %v349 = vunpack.c.l.b16 %v154
    %v350 = vunpack.c.h.b16 %v154
    %v351 = vunpack.c.l.b16 %v155
    %v352 = vunpack.c.h.b16 %v155
    %v353 = vunpack.c.l.b16 %v156
    %v354 = vunpack.c.h.b16 %v156
    %v355 = vunpack.c.l.b16 %v157
    %v356 = vunpack.c.h.b16 %v157
    %v357 = vunpack.c.l.b16 %v158
    %v358 = vunpack.c.h.b16 %v158
    %v359 = vunpack.c.l.b16 %v159
    %v360 = vunpack.c.h.b16 %v159
    %v361 = vunpack.c.l.b16 %v160
    %v362 = vunpack.c.h.b16 %v160
    %v363 = vunpack.c.l.b16 %v161
    %v364 = vunpack.c.h.b16 %v161
    %v365 = vunpack.c.l.b16 %v162
    %v366 = vunpack.c.h.b16 %v162
    %v367 = vunpack.c.l.b16 %v163
    %v368 = vunpack.c.h.b16 %v163
    %v369 = vunpack.c.l.b16 %v164
    %v370 = vunpack.c.h.b16 %v164
    %v371 = vunpack.c.l.b16 %v165
    %v372 = vunpack.c.h.b16 %v165
    %v373 = vunpack.c.l.b16 %v166
    %v374 = vunpack.c.h.b16 %v166
    %v375 = vunpack.c.l.b16 %v167
    %v376 = vunpack.c.h.b16 %v167
    %v377 = vunpack.c.l.b16 %v168
    %v378 = vunpack.c.h.b16 %v168
    %v379 = vunpack.c.l.b16 %v169
    %v380 = vunpack.c.h.b16 %v169
    %v381 = vunpack.c.l.b16 %v170
    %v382 = vunpack.c.h.b16 %v170
    %v383 = vunpack.c.l.b16 %v171
    %v384 = vunpack.c.h.b16 %v171
    %v385 = vunpack.c.l.b16 %v172
    %v386 = vunpack.c.h.b16 %v172
    %v387 = vunpack.c.l.b16 %v173
    %v388 = vunpack.c.h.b16 %v173
    %v389 = vunpack.c.l.b16 %v174
    %v390 = vunpack.c.h.b16 %v174
    %v391 = vunpack.c.l.b16 %v175
    %v392 = vunpack.c.h.b16 %v175
    %v393 = vunpack.c.l.b16 %v176
    %v394 = vunpack.c.h.b16 %v176
    %v395 = vunpack.c.l.b16 %v177
    %v396 = vunpack.c.h.b16 %v177
    %v397 = vunpack.c.l.b16 %v178
    %v398 = vunpack.c.h.b16 %v178
    %v399 = vunpack.c.l.b16 %v179
    %v400 = vunpack.c.h.b16 %v179
    %v401 = vunpack.c.l.b16 %v180
    %v402 = vunpack.c.h.b16 %v180
    %v403 = vunpack.c.l.b16 %v181
    %v404 = vunpack.c.h.b16 %v181
    %v405 = vunpack.c.l.b16 %v182
    %v406 = vunpack.c.h.b16 %v182
    %v407 = vunpack.c.l.b16 %v183
    %v408 = vunpack.c.h.b16 %v183
    %v409 = vunpack.c.l.b16 %v184
    %v410 = vunpack.c.h.b16 %v184
    %v411 = vunpack.c.l.b16 %v185
    %v412 = vunpack.c.h.b16 %v185
    %v413 = vunpack.c.l.b16 %v186
    %v414 = vunpack.c.h.b16 %v186
    %v415 = vunpack.c.l.b16 %v187
    %v416 = vunpack.c.h.b16 %v187
    %v417 = vunpack.c.l.b16 %v188
    %v418 = vunpack.c.h.b16 %v188
    %v419 = vunpack.c.l.b16 %v189
    %v420 = vunpack.c.h.b16 %v189
    %v421 = vunpack.c.l.b16 %v190
    %v422 = vunpack.c.h.b16 %v190
    %v423 = vunpack.c.l.b16 %v191
    %v424 = vunpack.c.h.b16 %v191
    %v425 = vunpack.c.l.b16 %v192
    %v426 = vunpack.c.h.b16 %v192
    %v427 = vunpack.c.l.b16 %v193
    %v428 = vunpack.c.h.b16 %v193
    %v429 = vunpack.c.l.b16 %v194
    %v430 = vunpack.c.h.b16 %v194
    %v431 = vunpack.c.l.b16 %v195
    %v432 = vunpack.c.h.b16 %v195
    %v433 = vunpack.c.l.b16 %v196
    %v434 = vunpack.c.h.b16 %v196
    %v435 = vunpack.c.l.b16 %v197
    %v436 = vunpack.c.h.b16 %v197
    %v437 = vunpack.c.l.b16 %v198
    %v438 = vunpack.c.h.b16 %v198
    %v439 = vunpack.c.l.b16 %v199
    %v440 = vunpack.c.h.b16 %v199
    %v441 = vunpack.c.l.b16 %v200
    %v442 = vunpack.c.h.b16 %v200
    %v443 = vunpack.c.l.b16 %v201
    %v444 = vunpack.c.h.b16 %v201
    %v445 = vunpack.c.l.b16 %v202
    %v446 = vunpack.c.h.b16 %v202
    %v447 = vunpack.c.l.b16 %v203
    %v448 = vunpack.c.h.b16 %v203
    %v449 = vunpack.c.l.b16 %v204
    %v450 = vunpack.c.h.b16 %v204
    %v451 = vunpack.c.l.b16 %v205
    %v452 = vunpack.c.h.b16 %v205
    %v453 = vunpack.c.l.b16 %v206
    %v454 = vunpack.c.h.b16 %v206
    %v455 = vunpack.c.l.b16 %v207
    %v456 = vunpack.c.h.b16 %v207
    %v457 = vunpack.c.l.b16 %v208
    %v458 = vunpack.c.h.b16 %v208
    %v459 = vunpack.c.l.b16 %v209
    %v460 = vunpack.c.h.b16 %v209
    %v461 = vunpack.c.l.b16 %v210
    %v462 = vunpack.c.h.b16 %v210
    %v463 = vunpack.c.l.b16 %v211
    %v464 = vunpack.c.h.b16 %v211
    %v465 = vunpack.c.l.b16 %v212
    %v466 = vunpack.c.h.b16 %v212
    %v467 = vunpack.c.l.b16 %v213
    %v468 = vunpack.c.h.b16 %v213
    %v469 = vunpack.c.l.b16 %v214
    %v470 = vunpack.c.h.b16 %v214
    %v471 = vunpack.c.l.b16 %v215
    %v472 = vunpack.c.h.b16 %v215
    %v473 = vunpack.c.l.b16 %v216
    %v474 = vunpack.c.h.b16 %v216
    %v475 = vunpack.c.l.b16 %v217
    %v476 = vunpack.c.h.b16 %v217
    %v477 = vunpack.c.l.b16 %v218
    %v478 = vunpack.c.h.b16 %v218
    %v479 = vunpack.c.l.b16 %v219
    %v480 = vunpack.c.h.b16 %v219
    %v481 = vunpack.c.l.b16 %v220
    %v482 = vunpack.c.h.b16 %v220
    %v483 = vunpack.c.l.b16 %v221
    %v484 = vunpack.c.h.b16 %v221
    %v485 = vunpack.c.l.b16 %v222
    %v486 = vunpack.c.h.b16 %v222
    %v487 = vunpack.c.l.b16 %v223
    %v488 = vunpack.c.h.b16 %v223
    %v489 = vunpack.c.l.b16 %v224
    %v490 = vunpack.c.h.b16 %v224
    %v491 = vunpack.c.l.b16 %v225
    %v492 = vunpack.c.h.b16 %v225
    %v493 = vunpack.c.l.b16 %v226
    %v494 = vunpack.c.h.b16 %v226
    %v495 = vunpack.c.l.b16 %v227
    %v496 = vunpack.c.h.b16 %v227
    %v497 = vunpack.c.l.b16 %v228
    %v498 = vunpack.c.h.b16 %v228
    %v499 = vunpack.c.l.b16 %v229
    %v500 = vunpack.c.h.b16 %v229
    %v501 = vunpack.c.l.b16 %v230
    %v502 = vunpack.c.h.b16 %v230
    %v503 = vunpack.c.l.b16 %v231
    %v504 = vunpack.c.h.b16 %v231
    %v505 = vunpack.c.l.b16 %v232
    %v506 = vunpack.c.h.b16 %v232
    %v507 = vunpack.c.l.b16 %v233
    %v508 = vunpack.c.h.b16 %v233
    %v509 = vunpack.c.l.b16 %v234
    %v510 = vunpack.c.h.b16 %v234
    %v511 = vunpack.c.l.b16 %v235
    %v512 = vunpack.c.h.b16 %v235
    %v513 = vunpack.c.l.b16 %v236
    %v514 = vunpack.c.h.b16 %v236
    %v515 = vunpack.c.l.b16 %v237
    %v516 = vunpack.c.h.b16 %v237
    %v517 = vunpack.c.l.b16 %v238
    %v518 = vunpack.c.h.b16 %v238
    %v519 = vunpack.c.l.b16 %v239
    %v520 = vunpack.c.h.b16 %v239
    %v521 = vunpack.c.l.b16 %v240
    %v522 = vunpack.c.h.b16 %v240
    %v523 = vunpack.c.l.b16 %v241
    %v524 = vunpack.c.h.b16 %v241
    %v525 = vunpack.c.l.b16 %v242
    %v526 = vunpack.c.h.b16 %v242
    %v527 = vunpack.c.l.b16 %v243
    %v528 = vunpack.c.h.b16 %v243
    %v529 = vunpack.c.l.b16 %v244
    %v530 = vunpack.c.h.b16 %v244
    %v531 = vunpack.c.l.b16 %v245
    %v532 = vunpack.c.h.b16 %v245
    %v533 = vunpack.c.l.b16 %v246
    %v534 = vunpack.c.h.b16 %v246
    %v535 = vpack.c.b16 %v347, %v343
    %v536 = vpack.c.b16 %v348, %v344
    %v537 = vpack.c.b16 %v349, %v345
    %v538 = vpack.c.b16 %v350, %v346
    %v539 = vpack.c.b16 %v355, %v351
    %v540 = vpack.c.b16 %v356, %v352
    %v541 = vpack.c.b16 %v357, %v353
    %v542 = vpack.c.b16 %v358, %v354
    %v543 = vpack.c.b16 %v363, %v359
    %v544 = vpack.c.b16 %v364, %v360
    %v545 = vpack.c.b16 %v365, %v361
    %v546 = vpack.c.b16 %v366, %v362
    %v547 = vpack.c.b16 %v371, %v367
    %v548 = vpack.c.b16 %v372, %v368
    %v549 = vpack.c.b16 %v373, %v369
    %v550 = vpack.c.b16 %v374, %v370
    %v551 = vpack.c.b16 %v379, %v375
    %v552 = vpack.c.b16 %v380, %v376
    %v553 = vpack.c.b16 %v381, %v377
    %v554 = vpack.c.b16 %v382, %v378
    %v555 = vpack.c.b16 %v387, %v383
    %v556 = vpack.c.b16 %v388, %v384
    %v557 = vpack.c.b16 %v389, %v385
    %v558 = vpack.c.b16 %v390, %v386
    %v559 = vpack.c.b16 %v395, %v391
    %v560 = vpack.c.b16 %v396, %v392
    %v561 = vpack.c.b16 %v397, %v393
    %v562 = vpack.c.b16 %v398, %v394
    %v563 = vpack.c.b16 %v403, %v399
    %v564 = vpack.c.b16 %v404, %v400
    %v565 = vpack.c.b16 %v405, %v401
    %v566 = vpack.c.b16 %v406, %v402
    %v567 = vpack.c.b16 %v411, %v407
    %v568 = vpack.c.b16 %v412, %v408
    %v569 = vpack.c.b16 %v413, %v409
    %v570 = vpack.c.b16 %v414, %v410
    %v571 = vpack.c.b16 %v419, %v415
    %v572 = vpack.c.b16 %v420, %v416
    %v573 = vpack.c.b16 %v421, %v417
    %v574 = vpack.c.b16 %v422, %v418
    %v575 = vpack.c.b16 %v427, %v423
    %v576 = vpack.c.b16 %v428, %v424
    %v577 = vpack.c.b16 %v429, %v425
    %v578 = vpack.c.b16 %v430, %v426
    %v579 = vpack.c.b16 %v435, %v431
    %v580 = vpack.c.b16 %v436, %v432
    %v581 = vpack.c.b16 %v437, %v433
    %v582 = vpack.c.b16 %v438, %v434
    %v583 = vpack.c.b16 %v443, %v439
    %v584 = vpack.c.b16 %v444, %v440
    %v585 = vpack.c.b16 %v445, %v441
    %v586 = vpack.c.b16 %v446, %v442
    %v587 = vpack.c.b16 %v451, %v447
    %v588 = vpack.c.b16 %v452, %v448
    %v589 = vpack.c.b16 %v453, %v449
    %v590 = vpack.c.b16 %v454, %v450
    %v591 = vpack.c.b16 %v459, %v455
    %v592 = vpack.c.b16 %v460, %v456
    %v593 = vpack.c.b16 %v461, %v457
    %v594 = vpack.c.b16 %v462, %v458
    %v595 = vpack.c.b16 %v467, %v463
    %v596 = vpack.c.b16 %v468, %v464
    %v597 = vpack.c.b16 %v469, %v465
    %v598 = vpack.c.b16 %v470, %v466
    %v599 = vpack.c.b16 %v475, %v471
    %v600 = vpack.c.b16 %v476, %v472
    %v601 = vpack.c.b16 %v477, %v473
    %v602 = vpack.c.b16 %v478, %v474
    %v603 = vpack.c.b16 %v483, %v479
    %v604 = vpack.c.b16 %v484, %v480
    %v605 = vpack.c.b16 %v485, %v481
    %v606 = vpack.c.b16 %v486, %v482
    %v607 = vpack.c.b16 %v491, %v487
    %v608 = vpack.c.b16 %v492, %v488
    %v609 = vpack.c.b16 %v493, %v489
    %v610 = vpack.c.b16 %v494, %v490
    %v611 = vpack.c.b16 %v499, %v495
    %v612 = vpack.c.b16 %v500, %v496
    %v613 = vpack.c.b16 %v501, %v497
    %v614 = vpack.c.b16 %v502, %v498
    %v615 = vpack.c.b16 %v507, %v503
    %v616 = vpack.c.b16 %v508, %v504
    %v617 = vpack.c.b16 %v509, %v505
    %v618 = vpack.c.b16 %v510, %v506
    %v619 = vpack.c.b16 %v515, %v511
    %v620 = vpack.c.b16 %v516, %v512
    %v621 = vpack.c.b16 %v517, %v513
    %v622 = vpack.c.b16 %v518, %v514
    %v623 = vpack.c.b16 %v523, %v519
    %v624 = vpack.c.b16 %v524, %v520
    %v625 = vpack.c.b16 %v525, %v521
    %v626 = vpack.c.b16 %v526, %v522
    %v627 = vpack.c.b16 %v531, %v527
    %v628 = vpack.c.b16 %v532, %v528
    %v629 = vpack.c.b16 %v533, %v529
    %v630 = vpack.c.b16 %v534, %v530
    %727 = vmatpush.bf16.msra.mxu0 %v563
    %728 = vmatpush.bf16.msra.mxu0 %v559
    %729 = vmatpush.bf16.msra.mxu0 %v555
    %730 = vmatpush.bf16.msra.mxu0 %v551
    %731 = vmatpush.bf16.msra.mxu0 %v547
    %732 = vmatpush.bf16.msra.mxu0 %v543
    %733 = vmatpush.bf16.msra.mxu0 %v539
    %734 = vmatpush.bf16.msra.mxu0 %v535
    %735 = vmatmul.bf16.gmra.mxu0 %v148
    %v736 = vpop.f32.mrf.mxu0
    %v737 = vadd.f32 0.0, %v736
    %v738 = vpop.f32.mrf.mxu0
    %739 = vdwg.mxu0
    %740 = vmatpush.bf16.msra.mxu0 %v595
    %741 = vmatpush.bf16.msra.mxu0 %v591
    %742 = vmatpush.bf16.msra.mxu0 %v587
    %743 = vmatpush.bf16.msra.mxu0 %v583
    %744 = vmatpush.bf16.msra.mxu0 %v579
    %745 = vmatpush.bf16.msra.mxu0 %v575
    %746 = vmatpush.bf16.msra.mxu0 %v571
    %747 = vmatpush.bf16.msra.mxu0 %v567
    %748 = vmatmul.bf16.gmra.mxu0 %v149
    %v749 = vpop.f32.mrf.mxu0
    %v750 = vadd.f32 %v737, %v749
    %v751 = vpop.f32.mrf.mxu0
    %752 = vdwg.mxu0
    %753 = vmatpush.bf16.msra.mxu0 %v627
    %754 = vmatpush.bf16.msra.mxu0 %v623
    %755 = vmatpush.bf16.msra.mxu0 %v619
    %756 = vmatpush.bf16.msra.mxu0 %v615
    %757 = vmatpush.bf16.msra.mxu0 %v611
    %758 = vmatpush.bf16.msra.mxu0 %v607
    %759 = vmatpush.bf16.msra.mxu0 %v603
    %760 = vmatpush.bf16.msra.mxu0 %v599
    %761 = vmatmul.bf16.gmra.mxu0 %v150
    %v762 = vpop.f32.mrf.mxu0
    %v763 = vadd.f32 %v750, %v762
    %v764 = vpop.f32.mrf.mxu0
    %765 = vdwg.mxu0
    %766 = vmatpush.bf16.msra.mxu0 %v564
    %767 = vmatpush.bf16.msra.mxu0 %v560
    %768 = vmatpush.bf16.msra.mxu0 %v556
    %769 = vmatpush.bf16.msra.mxu0 %v552
    %770 = vmatpush.bf16.msra.mxu0 %v548
    %771 = vmatpush.bf16.msra.mxu0 %v544
    %772 = vmatpush.bf16.msra.mxu0 %v540
    %773 = vmatpush.bf16.msra.mxu0 %v536
    %774 = vmatmul.bf16.gmra.mxu0 %v148
    %v775 = vpop.f32.mrf.mxu0
    %v776 = vadd.f32 0.0, %v775
    %v777 = vpop.f32.mrf.mxu0
    %778 = vdwg.mxu0
    %779 = vmatpush.bf16.msra.mxu0 %v596
    %780 = vmatpush.bf16.msra.mxu0 %v592
    %781 = vmatpush.bf16.msra.mxu0 %v588
    %782 = vmatpush.bf16.msra.mxu0 %v584
    %783 = vmatpush.bf16.msra.mxu0 %v580
    %784 = vmatpush.bf16.msra.mxu0 %v576
    %785 = vmatpush.bf16.msra.mxu0 %v572
    %786 = vmatpush.bf16.msra.mxu0 %v568
    %787 = vmatmul.bf16.gmra.mxu0 %v149
    %v788 = vpop.f32.mrf.mxu0
    %v789 = vadd.f32 %v776, %v788
    %v790 = vpop.f32.mrf.mxu0
    %791 = vdwg.mxu0
    %792 = vmatpush.bf16.msra.mxu0 %v628
    %793 = vmatpush.bf16.msra.mxu0 %v624
    %794 = vmatpush.bf16.msra.mxu0 %v620
    %795 = vmatpush.bf16.msra.mxu0 %v616
    %796 = vmatpush.bf16.msra.mxu0 %v612
    %797 = vmatpush.bf16.msra.mxu0 %v608
    %798 = vmatpush.bf16.msra.mxu0 %v604
    %799 = vmatpush.bf16.msra.mxu0 %v600
    %800 = vmatmul.bf16.gmra.mxu0 %v150
    %v801 = vpop.f32.mrf.mxu0
    %v802 = vadd.f32 %v789, %v801
    %v803 = vpop.f32.mrf.mxu0
    %804 = vdwg.mxu0
    %805 = vmatpush.bf16.msra.mxu0 %v565
    %806 = vmatpush.bf16.msra.mxu0 %v561
    %807 = vmatpush.bf16.msra.mxu0 %v557
    %808 = vmatpush.bf16.msra.mxu0 %v553
    %809 = vmatpush.bf16.msra.mxu0 %v549
    %810 = vmatpush.bf16.msra.mxu0 %v545
    %811 = vmatpush.bf16.msra.mxu0 %v541
    %812 = vmatpush.bf16.msra.mxu0 %v537
    %813 = vmatmul.bf16.gmra.mxu0 %v148
    %v814 = vpop.f32.mrf.mxu0
    %v815 = vadd.f32 0.0, %v814
    %v816 = vpop.f32.mrf.mxu0
    %817 = vdwg.mxu0
    %818 = vmatpush.bf16.msra.mxu0 %v597
    %819 = vmatpush.bf16.msra.mxu0 %v593
    %820 = vmatpush.bf16.msra.mxu0 %v589
    %821 = vmatpush.bf16.msra.mxu0 %v585
    %822 = vmatpush.bf16.msra.mxu0 %v581
    %823 = vmatpush.bf16.msra.mxu0 %v577
    %824 = vmatpush.bf16.msra.mxu0 %v573
    %825 = vmatpush.bf16.msra.mxu0 %v569
    %826 = vmatmul.bf16.gmra.mxu0 %v149
    %v827 = vpop.f32.mrf.mxu0
    %v828 = vadd.f32 %v815, %v827
    %v829 = vpop.f32.mrf.mxu0
    %830 = vdwg.mxu0
    %831 = vmatpush.bf16.msra.mxu0 %v629
    %832 = vmatpush.bf16.msra.mxu0 %v625
    %833 = vmatpush.bf16.msra.mxu0 %v621
    %834 = vmatpush.bf16.msra.mxu0 %v617
    %835 = vmatpush.bf16.msra.mxu0 %v613
    %836 = vmatpush.bf16.msra.mxu0 %v609
    %837 = vmatpush.bf16.msra.mxu0 %v605
    %838 = vmatpush.bf16.msra.mxu0 %v601
    %839 = vmatmul.bf16.gmra.mxu0 %v150
    %v840 = vpop.f32.mrf.mxu0
    %v841 = vadd.f32 %v828, %v840
    %v842 = vpop.f32.mrf.mxu0
    %843 = vdwg.mxu0
    %844 = vmatpush.bf16.msra.mxu0 %v566
    %845 = vmatpush.bf16.msra.mxu0 %v562
    %846 = vmatpush.bf16.msra.mxu0 %v558
    %847 = vmatpush.bf16.msra.mxu0 %v554
    %848 = vmatpush.bf16.msra.mxu0 %v550
    %849 = vmatpush.bf16.msra.mxu0 %v546
    %850 = vmatpush.bf16.msra.mxu0 %v542
    %851 = vmatpush.bf16.msra.mxu0 %v538
    %852 = vmatmul.bf16.gmra.mxu0 %v148
    %v853 = vpop.f32.mrf.mxu0
    %v854 = vadd.f32 0.0, %v853
    %v855 = vpop.f32.mrf.mxu0
    %856 = vdwg.mxu0
    %857 = vmatpush.bf16.msra.mxu0 %v598
    %858 = vmatpush.bf16.msra.mxu0 %v594
    %859 = vmatpush.bf16.msra.mxu0 %v590
    %860 = vmatpush.bf16.msra.mxu0 %v586
    %861 = vmatpush.bf16.msra.mxu0 %v582
    %862 = vmatpush.bf16.msra.mxu0 %v578
    %863 = vmatpush.bf16.msra.mxu0 %v574
    %864 = vmatpush.bf16.msra.mxu0 %v570
    %865 = vmatmul.bf16.gmra.mxu0 %v149
    %v866 = vpop.f32.mrf.mxu0
    %v867 = vadd.f32 %v854, %v866
    %v868 = vpop.f32.mrf.mxu0
    %869 = vdwg.mxu0
    %870 = vmatpush.bf16.msra.mxu0 %v630
    %871 = vmatpush.bf16.msra.mxu0 %v626
    %872 = vmatpush.bf16.msra.mxu0 %v622
    %873 = vmatpush.bf16.msra.mxu0 %v618
    %874 = vmatpush.bf16.msra.mxu0 %v614
    %875 = vmatpush.bf16.msra.mxu0 %v610
    %876 = vmatpush.bf16.msra.mxu0 %v606
    %877 = vmatpush.bf16.msra.mxu0 %v602
    %878 = vmatmul.bf16.gmra.mxu0 %v150
    %v879 = vpop.f32.mrf.mxu0
    %v880 = vadd.f32 %v867, %v879
    %v881 = vpop.f32.mrf.mxu0
    %882 = vdwg.mxu0
    %v979 = vunpack.c.l.b16 %v44
    %v980 = vunpack.c.h.b16 %v44
    %v981 = vunpack.c.l.b16 %v45
    %v982 = vunpack.c.h.b16 %v45
    %v983 = vunpack.c.l.b16 %v46
    %v984 = vunpack.c.h.b16 %v46
    %v985 = vunpack.c.l.b16 %v47
    %v986 = vunpack.c.h.b16 %v47
    %v987 = vunpack.c.l.b16 %v48
    %v988 = vunpack.c.h.b16 %v48
    %v989 = vunpack.c.l.b16 %v49
    %v990 = vunpack.c.h.b16 %v49
    %v991 = vunpack.c.l.b16 %v50
    %v992 = vunpack.c.h.b16 %v50
    %v993 = vunpack.c.l.b16 %v51
    %v994 = vunpack.c.h.b16 %v51
    %v995 = vunpack.c.l.b16 %v52
    %v996 = vunpack.c.h.b16 %v52
    %v997 = vunpack.c.l.b16 %v53
    %v998 = vunpack.c.h.b16 %v53
    %v999 = vunpack.c.l.b16 %v54
    %v1000 = vunpack.c.h.b16 %v54
    %v1001 = vunpack.c.l.b16 %v55
    %v1002 = vunpack.c.h.b16 %v55
    %v1003 = vunpack.c.l.b16 %v56
    %v1004 = vunpack.c.h.b16 %v56
    %v1005 = vunpack.c.l.b16 %v57
    %v1006 = vunpack.c.h.b16 %v57
    %v1007 = vunpack.c.l.b16 %v58
    %v1008 = vunpack.c.h.b16 %v58
    %v1009 = vunpack.c.l.b16 %v59
    %v1010 = vunpack.c.h.b16 %v59
    %v1011 = vunpack.c.l.b16 %v60
    %v1012 = vunpack.c.h.b16 %v60
    %v1013 = vunpack.c.l.b16 %v61
    %v1014 = vunpack.c.h.b16 %v61
    %v1015 = vunpack.c.l.b16 %v62
    %v1016 = vunpack.c.h.b16 %v62
    %v1017 = vunpack.c.l.b16 %v63
    %v1018 = vunpack.c.h.b16 %v63
    %v1019 = vunpack.c.l.b16 %v64
    %v1020 = vunpack.c.h.b16 %v64
    %v1021 = vunpack.c.l.b16 %v65
    %v1022 = vunpack.c.h.b16 %v65
    %v1023 = vunpack.c.l.b16 %v66
    %v1024 = vunpack.c.h.b16 %v66
    %v1025 = vunpack.c.l.b16 %v67
    %v1026 = vunpack.c.h.b16 %v67
    %v1027 = vunpack.c.l.b16 %v68
    %v1028 = vunpack.c.h.b16 %v68
    %v1029 = vunpack.c.l.b16 %v69
    %v1030 = vunpack.c.h.b16 %v69
    %v1031 = vunpack.c.l.b16 %v70
    %v1032 = vunpack.c.h.b16 %v70
    %v1033 = vunpack.c.l.b16 %v71
    %v1034 = vunpack.c.h.b16 %v71
    %v1035 = vunpack.c.l.b16 %v72
    %v1036 = vunpack.c.h.b16 %v72
    %v1037 = vunpack.c.l.b16 %v73
    %v1038 = vunpack.c.h.b16 %v73
    %v1039 = vunpack.c.l.b16 %v74
    %v1040 = vunpack.c.h.b16 %v74
    %v1041 = vunpack.c.l.b16 %v75
    %v1042 = vunpack.c.h.b16 %v75
    %v1043 = vunpack.c.l.b16 %v76
    %v1044 = vunpack.c.h.b16 %v76
    %v1045 = vunpack.c.l.b16 %v77
    %v1046 = vunpack.c.h.b16 %v77
    %v1047 = vunpack.c.l.b16 %v78
    %v1048 = vunpack.c.h.b16 %v78
    %v1049 = vunpack.c.l.b16 %v79
    %v1050 = vunpack.c.h.b16 %v79
    %v1051 = vunpack.c.l.b16 %v80
    %v1052 = vunpack.c.h.b16 %v80
    %v1053 = vunpack.c.l.b16 %v81
    %v1054 = vunpack.c.h.b16 %v81
    %v1055 = vunpack.c.l.b16 %v82
    %v1056 = vunpack.c.h.b16 %v82
    %v1057 = vunpack.c.l.b16 %v83
    %v1058 = vunpack.c.h.b16 %v83
    %v1059 = vunpack.c.l.b16 %v84
    %v1060 = vunpack.c.h.b16 %v84
    %v1061 = vunpack.c.l.b16 %v85
    %v1062 = vunpack.c.h.b16 %v85
    %v1063 = vunpack.c.l.b16 %v86
    %v1064 = vunpack.c.h.b16 %v86
    %v1065 = vunpack.c.l.b16 %v87
    %v1066 = vunpack.c.h.b16 %v87
    %v1067 = vunpack.c.l.b16 %v88
    %v1068 = vunpack.c.h.b16 %v88
    %v1069 = vunpack.c.l.b16 %v89
    %v1070 = vunpack.c.h.b16 %v89
    %v1071 = vunpack.c.l.b16 %v90
    %v1072 = vunpack.c.h.b16 %v90
    %v1073 = vunpack.c.l.b16 %v91
    %v1074 = vunpack.c.h.b16 %v91
    %v1075 = vunpack.c.l.b16 %v92
    %v1076 = vunpack.c.h.b16 %v92
    %v1077 = vunpack.c.l.b16 %v93
    %v1078 = vunpack.c.h.b16 %v93
    %v1079 = vunpack.c.l.b16 %v94
    %v1080 = vunpack.c.h.b16 %v94
    %v1081 = vunpack.c.l.b16 %v95
    %v1082 = vunpack.c.h.b16 %v95
    %v1083 = vunpack.c.l.b16 %v96
    %v1084 = vunpack.c.h.b16 %v96
    %v1085 = vunpack.c.l.b16 %v97
    %v1086 = vunpack.c.h.b16 %v97
    %v1087 = vunpack.c.l.b16 %v98
    %v1088 = vunpack.c.h.b16 %v98
    %v1089 = vunpack.c.l.b16 %v99
    %v1090 = vunpack.c.h.b16 %v99
    %v1091 = vunpack.c.l.b16 %v100
    %v1092 = vunpack.c.h.b16 %v100
    %v1093 = vunpack.c.l.b16 %v101
    %v1094 = vunpack.c.h.b16 %v101
    %v1095 = vunpack.c.l.b16 %v102
    %v1096 = vunpack.c.h.b16 %v102
    %v1097 = vunpack.c.l.b16 %v103
    %v1098 = vunpack.c.h.b16 %v103
    %v1099 = vunpack.c.l.b16 %v104
    %v1100 = vunpack.c.h.b16 %v104
    %v1101 = vunpack.c.l.b16 %v105
    %v1102 = vunpack.c.h.b16 %v105
    %v1103 = vunpack.c.l.b16 %v106
    %v1104 = vunpack.c.h.b16 %v106
    %v1105 = vunpack.c.l.b16 %v107
    %v1106 = vunpack.c.h.b16 %v107
    %v1107 = vunpack.c.l.b16 %v108
    %v1108 = vunpack.c.h.b16 %v108
    %v1109 = vunpack.c.l.b16 %v109
    %v1110 = vunpack.c.h.b16 %v109
    %v1111 = vunpack.c.l.b16 %v110
    %v1112 = vunpack.c.h.b16 %v110
    %v1113 = vunpack.c.l.b16 %v111
    %v1114 = vunpack.c.h.b16 %v111
    %v1115 = vunpack.c.l.b16 %v112
    %v1116 = vunpack.c.h.b16 %v112
    %v1117 = vunpack.c.l.b16 %v113
    %v1118 = vunpack.c.h.b16 %v113
    %v1119 = vunpack.c.l.b16 %v114
    %v1120 = vunpack.c.h.b16 %v114
    %v1121 = vunpack.c.l.b16 %v115
    %v1122 = vunpack.c.h.b16 %v115
    %v1123 = vunpack.c.l.b16 %v116
    %v1124 = vunpack.c.h.b16 %v116
    %v1125 = vunpack.c.l.b16 %v117
    %v1126 = vunpack.c.h.b16 %v117
    %v1127 = vunpack.c.l.b16 %v118
    %v1128 = vunpack.c.h.b16 %v118
    %v1129 = vunpack.c.l.b16 %v119
    %v1130 = vunpack.c.h.b16 %v119
    %v1131 = vunpack.c.l.b16 %v120
    %v1132 = vunpack.c.h.b16 %v120
    %v1133 = vunpack.c.l.b16 %v121
    %v1134 = vunpack.c.h.b16 %v121
    %v1135 = vunpack.c.l.b16 %v122
    %v1136 = vunpack.c.h.b16 %v122
    %v1137 = vunpack.c.l.b16 %v123
    %v1138 = vunpack.c.h.b16 %v123
    %v1139 = vunpack.c.l.b16 %v124
    %v1140 = vunpack.c.h.b16 %v124
    %v1141 = vunpack.c.l.b16 %v125
    %v1142 = vunpack.c.h.b16 %v125
    %v1143 = vunpack.c.l.b16 %v126
    %v1144 = vunpack.c.h.b16 %v126
    %v1145 = vunpack.c.l.b16 %v127
    %v1146 = vunpack.c.h.b16 %v127
    %v1147 = vunpack.c.l.b16 %v128
    %v1148 = vunpack.c.h.b16 %v128
    %v1149 = vunpack.c.l.b16 %v129
    %v1150 = vunpack.c.h.b16 %v129
    %v1151 = vunpack.c.l.b16 %v130
    %v1152 = vunpack.c.h.b16 %v130
    %v1153 = vunpack.c.l.b16 %v131
    %v1154 = vunpack.c.h.b16 %v131
    %v1155 = vunpack.c.l.b16 %v132
    %v1156 = vunpack.c.h.b16 %v132
    %v1157 = vunpack.c.l.b16 %v133
    %v1158 = vunpack.c.h.b16 %v133
    %v1159 = vunpack.c.l.b16 %v134
    %v1160 = vunpack.c.h.b16 %v134
    %v1161 = vunpack.c.l.b16 %v135
    %v1162 = vunpack.c.h.b16 %v135
    %v1163 = vunpack.c.l.b16 %v136
    %v1164 = vunpack.c.h.b16 %v136
    %v1165 = vunpack.c.l.b16 %v137
    %v1166 = vunpack.c.h.b16 %v137
    %v1167 = vunpack.c.l.b16 %v138
    %v1168 = vunpack.c.h.b16 %v138
    %v1169 = vunpack.c.l.b16 %v139
    %v1170 = vunpack.c.h.b16 %v139
    %v1171 = vpack.c.b16 %v983, %v979
    %v1172 = vpack.c.b16 %v984, %v980
    %v1173 = vpack.c.b16 %v985, %v981
    %v1174 = vpack.c.b16 %v986, %v982
    %v1175 = vpack.c.b16 %v991, %v987
    %v1176 = vpack.c.b16 %v992, %v988
    %v1177 = vpack.c.b16 %v993, %v989
    %v1178 = vpack.c.b16 %v994, %v990
    %v1179 = vpack.c.b16 %v999, %v995
    %v1180 = vpack.c.b16 %v1000, %v996
    %v1181 = vpack.c.b16 %v1001, %v997
    %v1182 = vpack.c.b16 %v1002, %v998
    %v1183 = vpack.c.b16 %v1007, %v1003
    %v1184 = vpack.c.b16 %v1008, %v1004
    %v1185 = vpack.c.b16 %v1009, %v1005
    %v1186 = vpack.c.b16 %v1010, %v1006
    %v1187 = vpack.c.b16 %v1015, %v1011
    %v1188 = vpack.c.b16 %v1016, %v1012
    %v1189 = vpack.c.b16 %v1017, %v1013
    %v1190 = vpack.c.b16 %v1018, %v1014
    %v1191 = vpack.c.b16 %v1023, %v1019
    %v1192 = vpack.c.b16 %v1024, %v1020
    %v1193 = vpack.c.b16 %v1025, %v1021
    %v1194 = vpack.c.b16 %v1026, %v1022
    %v1195 = vpack.c.b16 %v1031, %v1027
    %v1196 = vpack.c.b16 %v1032, %v1028
    %v1197 = vpack.c.b16 %v1033, %v1029
    %v1198 = vpack.c.b16 %v1034, %v1030
    %v1199 = vpack.c.b16 %v1039, %v1035
    %v1200 = vpack.c.b16 %v1040, %v1036
    %v1201 = vpack.c.b16 %v1041, %v1037
    %v1202 = vpack.c.b16 %v1042, %v1038
    %v1203 = vpack.c.b16 %v1047, %v1043
    %v1204 = vpack.c.b16 %v1048, %v1044
    %v1205 = vpack.c.b16 %v1049, %v1045
    %v1206 = vpack.c.b16 %v1050, %v1046
    %v1207 = vpack.c.b16 %v1055, %v1051
    %v1208 = vpack.c.b16 %v1056, %v1052
    %v1209 = vpack.c.b16 %v1057, %v1053
    %v1210 = vpack.c.b16 %v1058, %v1054
    %v1211 = vpack.c.b16 %v1063, %v1059
    %v1212 = vpack.c.b16 %v1064, %v1060
    %v1213 = vpack.c.b16 %v1065, %v1061
    %v1214 = vpack.c.b16 %v1066, %v1062
    %v1215 = vpack.c.b16 %v1071, %v1067
    %v1216 = vpack.c.b16 %v1072, %v1068
    %v1217 = vpack.c.b16 %v1073, %v1069
    %v1218 = vpack.c.b16 %v1074, %v1070
    %v1219 = vpack.c.b16 %v1079, %v1075
    %v1220 = vpack.c.b16 %v1080, %v1076
    %v1221 = vpack.c.b16 %v1081, %v1077
    %v1222 = vpack.c.b16 %v1082, %v1078
    %v1223 = vpack.c.b16 %v1087, %v1083
    %v1224 = vpack.c.b16 %v1088, %v1084
    %v1225 = vpack.c.b16 %v1089, %v1085
    %v1226 = vpack.c.b16 %v1090, %v1086
    %v1227 = vpack.c.b16 %v1095, %v1091
    %v1228 = vpack.c.b16 %v1096, %v1092
    %v1229 = vpack.c.b16 %v1097, %v1093
    %v1230 = vpack.c.b16 %v1098, %v1094
    %v1231 = vpack.c.b16 %v1103, %v1099
    %v1232 = vpack.c.b16 %v1104, %v1100
    %v1233 = vpack.c.b16 %v1105, %v1101
    %v1234 = vpack.c.b16 %v1106, %v1102
    %v1235 = vpack.c.b16 %v1111, %v1107
    %v1236 = vpack.c.b16 %v1112, %v1108
    %v1237 = vpack.c.b16 %v1113, %v1109
    %v1238 = vpack.c.b16 %v1114, %v1110
    %v1239 = vpack.c.b16 %v1119, %v1115
    %v1240 = vpack.c.b16 %v1120, %v1116
    %v1241 = vpack.c.b16 %v1121, %v1117
    %v1242 = vpack.c.b16 %v1122, %v1118
    %v1243 = vpack.c.b16 %v1127, %v1123
    %v1244 = vpack.c.b16 %v1128, %v1124
    %v1245 = vpack.c.b16 %v1129, %v1125
    %v1246 = vpack.c.b16 %v1130, %v1126
    %v1247 = vpack.c.b16 %v1135, %v1131
    %v1248 = vpack.c.b16 %v1136, %v1132
    %v1249 = vpack.c.b16 %v1137, %v1133
    %v1250 = vpack.c.b16 %v1138, %v1134
    %v1251 = vpack.c.b16 %v1143, %v1139
    %v1252 = vpack.c.b16 %v1144, %v1140
    %v1253 = vpack.c.b16 %v1145, %v1141
    %v1254 = vpack.c.b16 %v1146, %v1142
    %v1255 = vpack.c.b16 %v1151, %v1147
    %v1256 = vpack.c.b16 %v1152, %v1148
    %v1257 = vpack.c.b16 %v1153, %v1149
    %v1258 = vpack.c.b16 %v1154, %v1150
    %v1259 = vpack.c.b16 %v1159, %v1155
    %v1260 = vpack.c.b16 %v1160, %v1156
    %v1261 = vpack.c.b16 %v1161, %v1157
    %v1262 = vpack.c.b16 %v1162, %v1158
    %v1263 = vpack.c.b16 %v1167, %v1163
    %v1264 = vpack.c.b16 %v1168, %v1164
    %v1265 = vpack.c.b16 %v1169, %v1165
    %v1266 = vpack.c.b16 %v1170, %v1166
    %1363 = vmatpush.bf16.msra.mxu0 %v1199
    %1364 = vmatpush.bf16.msra.mxu0 %v1195
    %1365 = vmatpush.bf16.msra.mxu0 %v1191
    %1366 = vmatpush.bf16.msra.mxu0 %v1187
    %1367 = vmatpush.bf16.msra.mxu0 %v1183
    %1368 = vmatpush.bf16.msra.mxu0 %v1179
    %1369 = vmatpush.bf16.msra.mxu0 %v1175
    %1370 = vmatpush.bf16.msra.mxu0 %v1171
    %1371 = vmatmul.bf16.gmra.mxu0 %v41
    %v1372 = vpop.f32.mrf.mxu0
    %v1373 = vadd.f32 %v763, %v1372
    %v1374 = vpop.f32.mrf.mxu0
    %1375 = vdwg.mxu0
    %1376 = vmatpush.bf16.msra.mxu0 %v1231
    %1377 = vmatpush.bf16.msra.mxu0 %v1227
    %1378 = vmatpush.bf16.msra.mxu0 %v1223
    %1379 = vmatpush.bf16.msra.mxu0 %v1219
    %1380 = vmatpush.bf16.msra.mxu0 %v1215
    %1381 = vmatpush.bf16.msra.mxu0 %v1211
    %1382 = vmatpush.bf16.msra.mxu0 %v1207
    %1383 = vmatpush.bf16.msra.mxu0 %v1203
    %1384 = vmatmul.bf16.gmra.mxu0 %v42
    %v1385 = vpop.f32.mrf.mxu0
    %v1386 = vadd.f32 %v1373, %v1385
    %v1387 = vpop.f32.mrf.mxu0
    %1388 = vdwg.mxu0
    %1389 = vmatpush.bf16.msra.mxu0 %v1263
    %1390 = vmatpush.bf16.msra.mxu0 %v1259
    %1391 = vmatpush.bf16.msra.mxu0 %v1255
    %1392 = vmatpush.bf16.msra.mxu0 %v1251
    %1393 = vmatpush.bf16.msra.mxu0 %v1247
    %1394 = vmatpush.bf16.msra.mxu0 %v1243
    %1395 = vmatpush.bf16.msra.mxu0 %v1239
    %1396 = vmatpush.bf16.msra.mxu0 %v1235
    %1397 = vmatmul.bf16.gmra.mxu0 %v43
    %v1398 = vpop.f32.mrf.mxu0
    %v1399 = vadd.f32 %v1386, %v1398
    %v1400 = vpop.f32.mrf.mxu0
    %1401 = vdwg.mxu0
    %1402 = vmatpush.bf16.msra.mxu0 %v1200
    %1403 = vmatpush.bf16.msra.mxu0 %v1196
    %1404 = vmatpush.bf16.msra.mxu0 %v1192
    %1405 = vmatpush.bf16.msra.mxu0 %v1188
    %1406 = vmatpush.bf16.msra.mxu0 %v1184
    %1407 = vmatpush.bf16.msra.mxu0 %v1180
    %1408 = vmatpush.bf16.msra.mxu0 %v1176
    %1409 = vmatpush.bf16.msra.mxu0 %v1172
    %1410 = vmatmul.bf16.gmra.mxu0 %v41
    %v1411 = vpop.f32.mrf.mxu0
    %v1412 = vadd.f32 %v802, %v1411
    %v1413 = vpop.f32.mrf.mxu0
    %1414 = vdwg.mxu0
    %1415 = vmatpush.bf16.msra.mxu0 %v1232
    %1416 = vmatpush.bf16.msra.mxu0 %v1228
    %1417 = vmatpush.bf16.msra.mxu0 %v1224
    %1418 = vmatpush.bf16.msra.mxu0 %v1220
    %1419 = vmatpush.bf16.msra.mxu0 %v1216
    %1420 = vmatpush.bf16.msra.mxu0 %v1212
    %1421 = vmatpush.bf16.msra.mxu0 %v1208
    %1422 = vmatpush.bf16.msra.mxu0 %v1204
    %1423 = vmatmul.bf16.gmra.mxu0 %v42
    %v1424 = vpop.f32.mrf.mxu0
    %v1425 = vadd.f32 %v1412, %v1424
    %v1426 = vpop.f32.mrf.mxu0
    %1427 = vdwg.mxu0
    %1428 = vmatpush.bf16.msra.mxu0 %v1264
    %1429 = vmatpush.bf16.msra.mxu0 %v1260
    %1430 = vmatpush.bf16.msra.mxu0 %v1256
    %1431 = vmatpush.bf16.msra.mxu0 %v1252
    %1432 = vmatpush.bf16.msra.mxu0 %v1248
    %1433 = vmatpush.bf16.msra.mxu0 %v1244
    %1434 = vmatpush.bf16.msra.mxu0 %v1240
    %1435 = vmatpush.bf16.msra.mxu0 %v1236
    %1436 = vmatmul.bf16.gmra.mxu0 %v43
    %v1437 = vpop.f32.mrf.mxu0
    %v1438 = vadd.f32 %v1425, %v1437
    %v1439 = vpop.f32.mrf.mxu0
    %1440 = vdwg.mxu0
    %1441 = vmatpush.bf16.msra.mxu0 %v1201
    %1442 = vmatpush.bf16.msra.mxu0 %v1197
    %1443 = vmatpush.bf16.msra.mxu0 %v1193
    %1444 = vmatpush.bf16.msra.mxu0 %v1189
    %1445 = vmatpush.bf16.msra.mxu0 %v1185
    %1446 = vmatpush.bf16.msra.mxu0 %v1181
    %1447 = vmatpush.bf16.msra.mxu0 %v1177
    %1448 = vmatpush.bf16.msra.mxu0 %v1173
    %1449 = vmatmul.bf16.gmra.mxu0 %v41
    %v1450 = vpop.f32.mrf.mxu0
    %v1451 = vadd.f32 %v841, %v1450
    %v1452 = vpop.f32.mrf.mxu0
    %1453 = vdwg.mxu0
    %1454 = vmatpush.bf16.msra.mxu0 %v1233
    %1455 = vmatpush.bf16.msra.mxu0 %v1229
    %1456 = vmatpush.bf16.msra.mxu0 %v1225
    %1457 = vmatpush.bf16.msra.mxu0 %v1221
    %1458 = vmatpush.bf16.msra.mxu0 %v1217
    %1459 = vmatpush.bf16.msra.mxu0 %v1213
    %1460 = vmatpush.bf16.msra.mxu0 %v1209
    %1461 = vmatpush.bf16.msra.mxu0 %v1205
    %1462 = vmatmul.bf16.gmra.mxu0 %v42
    %v1463 = vpop.f32.mrf.mxu0
    %v1464 = vadd.f32 %v1451, %v1463
    %v1465 = vpop.f32.mrf.mxu0
    %1466 = vdwg.mxu0
    %1467 = vmatpush.bf16.msra.mxu0 %v1265
    %1468 = vmatpush.bf16.msra.mxu0 %v1261
    %1469 = vmatpush.bf16.msra.mxu0 %v1257
    %1470 = vmatpush.bf16.msra.mxu0 %v1253
    %1471 = vmatpush.bf16.msra.mxu0 %v1249
    %1472 = vmatpush.bf16.msra.mxu0 %v1245
    %1473 = vmatpush.bf16.msra.mxu0 %v1241
    %1474 = vmatpush.bf16.msra.mxu0 %v1237
    %1475 = vmatmul.bf16.gmra.mxu0 %v43
    %v1476 = vpop.f32.mrf.mxu0
    %v1477 = vadd.f32 %v1464, %v1476
    %v1478 = vpop.f32.mrf.mxu0
    %1479 = vdwg.mxu0
    %1480 = vmatpush.bf16.msra.mxu0 %v1202
    %1481 = vmatpush.bf16.msra.mxu0 %v1198
    %1482 = vmatpush.bf16.msra.mxu0 %v1194
    %1483 = vmatpush.bf16.msra.mxu0 %v1190
    %1484 = vmatpush.bf16.msra.mxu0 %v1186
    %1485 = vmatpush.bf16.msra.mxu0 %v1182
    %1486 = vmatpush.bf16.msra.mxu0 %v1178
    %1487 = vmatpush.bf16.msra.mxu0 %v1174
    %1488 = vmatmul.bf16.gmra.mxu0 %v41
    %v1489 = vpop.f32.mrf.mxu0
    %v1490 = vadd.f32 %v880, %v1489
    %v1491 = vpop.f32.mrf.mxu0
    %1492 = vdwg.mxu0
    %1493 = vmatpush.bf16.msra.mxu0 %v1234
    %1494 = vmatpush.bf16.msra.mxu0 %v1230
    %1495 = vmatpush.bf16.msra.mxu0 %v1226
    %1496 = vmatpush.bf16.msra.mxu0 %v1222
    %1497 = vmatpush.bf16.msra.mxu0 %v1218
    %1498 = vmatpush.bf16.msra.mxu0 %v1214
    %1499 = vmatpush.bf16.msra.mxu0 %v1210
    %1500 = vmatpush.bf16.msra.mxu0 %v1206
    %1501 = vmatmul.bf16.gmra.mxu0 %v42
    %v1502 = vpop.f32.mrf.mxu0
    %v1503 = vadd.f32 %v1490, %v1502
    %v1504 = vpop.f32.mrf.mxu0
    %1505 = vdwg.mxu0
    %1506 = vmatpush.bf16.msra.mxu0 %v1266
    %1507 = vmatpush.bf16.msra.mxu0 %v1262
    %1508 = vmatpush.bf16.msra.mxu0 %v1258
    %1509 = vmatpush.bf16.msra.mxu0 %v1254
    %1510 = vmatpush.bf16.msra.mxu0 %v1250
    %1511 = vmatpush.bf16.msra.mxu0 %v1246
    %1512 = vmatpush.bf16.msra.mxu0 %v1242
    %1513 = vmatpush.bf16.msra.mxu0 %v1238
    %1514 = vmatmul.bf16.gmra.mxu0 %v43
    %v1515 = vpop.f32.mrf.mxu0
    %v1516 = vadd.f32 %v1503, %v1515
    %v1517 = vpop.f32.mrf.mxu0
    %1518 = vdwg.mxu0
    %v1519 = vld [vmem:[%s4] sm:$0xf]
    %v1521 = vperm.slane %v1519, 0
    %v1522 = vperm.slane %v1519, 1
    %v1523 = vperm.slane %v1519, 2
    %v1524 = vperm.slane %v1519, 3
    %v1529 = vadd.f32 %v1399, %v1521
    %v1530 = vadd.f32 %v1438, %v1522
    %v1531 = vadd.f32 %v1477, %v1523
    %v1532 = vadd.f32 %v1516, %v1524
    %v1533 = vmax.f32 %v1529, 0.0
    %v1534 = vmax.f32 %v1530, 0.0
    %v1535 = vmax.f32 %v1531, 0.0
    %v1536 = vsub.f32 0.0, %v1532
    %v1537 = vmul.f32 %v1536, 1.442695
    %v1538 = vpow.pop %v1537
    %v1539 = vadd.f32 %v1538, 1.0
    %v1540 = vrcp.pop %v1539
    %v1541 = vmul.f32 %v1539, %v1540
    %v1542 = vsub.f32 1.0, %v1541
    %v1543 = vmul.f32 %v1540, %v1542
    %v1544 = vadd.f32 %v1540, %v1543
    %vm1545 = vweird.f32 %v1539
    %vm1546 = vweird.f32 %v1540
    %vm1547 = vmor %vm1545, %vm1546
    %v1548 = vsel %vm1547, %v1540, %v1544
    %v1549 = vand.u32 2147483647, %v1539
    %vm1550 = vcmp.eq.f32.partialorder %v1549, 8.507059e+37
    %v1551 = vand.u32 %v1539, 2147483648
    %v1552 = vor.u32 1.1754944e-38, %v1551
    %v1553 = vsel %vm1550, %v1552, %v1548
    %v1554 = vmul.f32 1.0, %v1553
    %v1555 = vpack.c.bf16 %v1533, %v1533
    %v1556 = vpack.c.bf16 %v1534, %v1534
    %v1557 = vpack.c.bf16 %v1535, %v1535
    %v1558 = vld [vmem:[%s5] sm:$0xf]
    %v1559 = vld [vmem:[%s5 + $0x4] sm:$0xf]
    %v1560 = vld [vmem:[%s5 + $0x8] sm:$0xf]
    %v1561 = vld [vmem:[%s5 + $0xc] sm:$0xf]
    %v1562 = vld [vmem:[%s5 + $0x10] sm:$0xf]
    %v1563 = vld [vmem:[%s5 + $0x14] sm:$0xf]
    %v1564 = vld [vmem:[%s5 + $0x18] sm:$0xf]
    %v1565 = vld [vmem:[%s5 + $0x1c] sm:$0xf]
    %v1566 = vld [vmem:[%s5 + $0x20] sm:$0xf]
    %v1567 = vld [vmem:[%s5 + $0x24] sm:$0xf]
    %v1568 = vld [vmem:[%s5 + $0x28] sm:$0xf]
    %v1569 = vld [vmem:[%s5 + $0x2c] sm:$0xf]
    %v1570 = vld [vmem:[%s5 + $0x30] sm:$0xf]
    %v1571 = vld [vmem:[%s5 + $0x34] sm:$0xf]
    %v1572 = vld [vmem:[%s5 + $0x38] sm:$0xf]
    %v1573 = vld [vmem:[%s5 + $0x3c] sm:$0xf]
    %v1574 = vld [vmem:[%s5 + $0x40] sm:$0xf]
    %v1575 = vld [vmem:[%s5 + $0x44] sm:$0xf]
    %v1576 = vld [vmem:[%s5 + $0x48] sm:$0xf]
    %v1577 = vld [vmem:[%s5 + $0x4c] sm:$0xf]
    %v1578 = vld [vmem:[%s5 + $0x50] sm:$0xf]
    %v1579 = vld [vmem:[%s5 + $0x54] sm:$0xf]
    %v1580 = vld [vmem:[%s5 + $0x58] sm:$0xf]
    %v1581 = vld [vmem:[%s5 + $0x5c] sm:$0xf]
    %v1582 = vld [vmem:[%s5 + $0x60] sm:$0xf]
    %v1583 = vld [vmem:[%s5 + $0x64] sm:$0xf]
    %v1584 = vld [vmem:[%s5 + $0x68] sm:$0xf]
    %v1585 = vld [vmem:[%s5 + $0x6c] sm:$0xf]
    %v1586 = vld [vmem:[%s5 + $0x70] sm:$0xf]
    %v1587 = vld [vmem:[%s5 + $0x74] sm:$0xf]
    %v1588 = vld [vmem:[%s5 + $0x78] sm:$0xf]
    %v1589 = vld [vmem:[%s5 + $0x7c] sm:$0xf]
    %v1590 = vld [vmem:[%s5 + $0x80] sm:$0xf]
    %v1591 = vld [vmem:[%s5 + $0x84] sm:$0xf]
    %v1592 = vld [vmem:[%s5 + $0x88] sm:$0xf]
    %v1593 = vld [vmem:[%s5 + $0x8c] sm:$0xf]
    %v1594 = vld [vmem:[%s5 + $0x90] sm:$0xf]
    %v1595 = vld [vmem:[%s5 + $0x94] sm:$0xf]
    %v1596 = vld [vmem:[%s5 + $0x98] sm:$0xf]
    %v1597 = vld [vmem:[%s5 + $0x9c] sm:$0xf]
    %v1598 = vld [vmem:[%s5 + $0xa0] sm:$0xf]
    %v1599 = vld [vmem:[%s5 + $0xa4] sm:$0xf]
    %v1600 = vld [vmem:[%s5 + $0xa8] sm:$0xf]
    %v1601 = vld [vmem:[%s5 + $0xac] sm:$0xf]
    %v1602 = vld [vmem:[%s5 + $0xb0] sm:$0xf]
    %v1603 = vld [vmem:[%s5 + $0xb4] sm:$0xf]
    %v1604 = vld [vmem:[%s5 + $0xb8] sm:$0xf]
    %v1605 = vld [vmem:[%s5 + $0xbc] sm:$0xf]
    %v1606 = vld [vmem:[%s6] sm:$0x1]
    %v1608 = vperm.slane %v1606, 0
    %v1658 = vunpack.c.l.b16 %v1558
    %v1659 = vunpack.c.l.b16 %v1559
    %v1660 = vunpack.c.l.b16 %v1560
    %v1661 = vunpack.c.l.b16 %v1561
    %v1662 = vunpack.c.l.b16 %v1562
    %v1663 = vunpack.c.l.b16 %v1563
    %v1664 = vunpack.c.l.b16 %v1564
    %v1665 = vunpack.c.l.b16 %v1565
    %v1666 = vunpack.c.l.b16 %v1566
    %v1667 = vunpack.c.l.b16 %v1567
    %v1668 = vunpack.c.l.b16 %v1568
    %v1669 = vunpack.c.l.b16 %v1569
    %v1670 = vunpack.c.l.b16 %v1570
    %v1671 = vunpack.c.l.b16 %v1571
    %v1672 = vunpack.c.l.b16 %v1572
    %v1673 = vunpack.c.l.b16 %v1573
    %v1674 = vunpack.c.l.b16 %v1574
    %v1675 = vunpack.c.l.b16 %v1575
    %v1676 = vunpack.c.l.b16 %v1576
    %v1677 = vunpack.c.l.b16 %v1577
    %v1678 = vunpack.c.l.b16 %v1578
    %v1679 = vunpack.c.l.b16 %v1579
    %v1680 = vunpack.c.l.b16 %v1580
    %v1681 = vunpack.c.l.b16 %v1581
    %v1682 = vunpack.c.l.b16 %v1582
    %v1683 = vunpack.c.l.b16 %v1583
    %v1684 = vunpack.c.l.b16 %v1584
    %v1685 = vunpack.c.l.b16 %v1585
    %v1686 = vunpack.c.l.b16 %v1586
    %v1687 = vunpack.c.l.b16 %v1587
    %v1688 = vunpack.c.l.b16 %v1588
    %v1689 = vunpack.c.l.b16 %v1589
    %v1690 = vunpack.c.l.b16 %v1590
    %v1691 = vunpack.c.l.b16 %v1591
    %v1692 = vunpack.c.l.b16 %v1592
    %v1693 = vunpack.c.l.b16 %v1593
    %v1694 = vunpack.c.l.b16 %v1594
    %v1695 = vunpack.c.l.b16 %v1595
    %v1696 = vunpack.c.l.b16 %v1596
    %v1697 = vunpack.c.l.b16 %v1597
    %v1698 = vunpack.c.l.b16 %v1598
    %v1699 = vunpack.c.l.b16 %v1599
    %v1700 = vunpack.c.l.b16 %v1600
    %v1701 = vunpack.c.l.b16 %v1601
    %v1702 = vunpack.c.l.b16 %v1602
    %v1703 = vunpack.c.l.b16 %v1603
    %v1704 = vunpack.c.l.b16 %v1604
    %v1705 = vunpack.c.l.b16 %v1605
    %v1706 = vpack.c.b16 %v1659, %v1658
    %v1707 = vpack.c.b16 %v1661, %v1660
    %v1708 = vpack.c.b16 %v1663, %v1662
    %v1709 = vpack.c.b16 %v1665, %v1664
    %v1710 = vpack.c.b16 %v1667, %v1666
    %v1711 = vpack.c.b16 %v1669, %v1668
    %v1712 = vpack.c.b16 %v1671, %v1670
    %v1713 = vpack.c.b16 %v1673, %v1672
    %v1714 = vpack.c.b16 %v1675, %v1674
    %v1715 = vpack.c.b16 %v1677, %v1676
    %v1716 = vpack.c.b16 %v1679, %v1678
    %v1717 = vpack.c.b16 %v1681, %v1680
    %v1718 = vpack.c.b16 %v1683, %v1682
    %v1719 = vpack.c.b16 %v1685, %v1684
    %v1720 = vpack.c.b16 %v1687, %v1686
    %v1721 = vpack.c.b16 %v1689, %v1688
    %v1722 = vpack.c.b16 %v1691, %v1690
    %v1723 = vpack.c.b16 %v1693, %v1692
    %v1724 = vpack.c.b16 %v1695, %v1694
    %v1725 = vpack.c.b16 %v1697, %v1696
    %v1726 = vpack.c.b16 %v1699, %v1698
    %v1727 = vpack.c.b16 %v1701, %v1700
    %v1728 = vpack.c.b16 %v1703, %v1702
    %v1729 = vpack.c.b16 %v1705, %v1704
    %1754 = vmatpush.bf16.msra.mxu0 %v1713
    %1755 = vmatpush.bf16.msra.mxu0 %v1712
    %1756 = vmatpush.bf16.msra.mxu0 %v1711
    %1757 = vmatpush.bf16.msra.mxu0 %v1710
    %1758 = vmatpush.bf16.msra.mxu0 %v1709
    %1759 = vmatpush.bf16.msra.mxu0 %v1708
    %1760 = vmatpush.bf16.msra.mxu0 %v1707
    %1761 = vmatpush.bf16.msra.mxu0 %v1706
    %1762 = vmatmul.bf16.gmra.mxu0 %v1555
    %v1763 = vpop.f32.mrf.mxu0
    %v1764 = vadd.f32 %v1608, %v1763
    %v1765 = vpop.f32.mrf.mxu0
    %1766 = vdwg.mxu0
    %1767 = vmatpush.bf16.msra.mxu0 %v1721
    %1768 = vmatpush.bf16.msra.mxu0 %v1720
    %1769 = vmatpush.bf16.msra.mxu0 %v1719
    %1770 = vmatpush.bf16.msra.mxu0 %v1718
    %1771 = vmatpush.bf16.msra.mxu0 %v1717
    %1772 = vmatpush.bf16.msra.mxu0 %v1716
    %1773 = vmatpush.bf16.msra.mxu0 %v1715
    %1774 = vmatpush.bf16.msra.mxu0 %v1714
    %1775 = vmatmul.bf16.gmra.mxu0 %v1556
    %v1776 = vpop.f32.mrf.mxu0
    %v1777 = vadd.f32 %v1764, %v1776
    %v1778 = vpop.f32.mrf.mxu0
    %1779 = vdwg.mxu0
    %1780 = vmatpush.bf16.msra.mxu0 %v1729
    %1781 = vmatpush.bf16.msra.mxu0 %v1728
    %1782 = vmatpush.bf16.msra.mxu0 %v1727
    %1783 = vmatpush.bf16.msra.mxu0 %v1726
    %1784 = vmatpush.bf16.msra.mxu0 %v1725
    %1785 = vmatpush.bf16.msra.mxu0 %v1724
    %1786 = vmatpush.bf16.msra.mxu0 %v1723
    %1787 = vmatpush.bf16.msra.mxu0 %v1722
    %1788 = vmatmul.bf16.gmra.mxu0 %v1557
    %v1789 = vpop.f32.mrf.mxu0
    %v1790 = vadd.f32 %v1777, %v1789
    %v1791 = vpop.f32.mrf.mxu0
    %1792 = vdwg.mxu0
    %v1793 = vsub.f32 0.0, %v1790
    %v1794 = vmul.f32 %v1793, 1.442695
    %v1795 = vpow.pop %v1794
    %v1796 = vadd.f32 %v1795, 1.0
    %v1797 = vrcp.pop %v1796
    %v1798 = vmul.f32 %v1796, %v1797
    %v1799 = vsub.f32 1.0, %v1798
    %v1800 = vmul.f32 %v1797, %v1799
    %v1801 = vadd.f32 %v1797, %v1800
    %vm1802 = vweird.f32 %v1796
    %vm1803 = vweird.f32 %v1797
    %vm1804 = vmor %vm1802, %vm1803
    %v1805 = vsel %vm1804, %v1797, %v1801
    %v1806 = vand.u32 2147483647, %v1796
    %vm1807 = vcmp.eq.f32.partialorder %v1806, 8.507059e+37
    %v1808 = vand.u32 %v1796, 2147483648
    %v1809 = vor.u32 1.1754944e-38, %v1808
    %v1810 = vsel %vm1807, %v1809, %v1805
    %v1811 = vmul.f32 1.0, %v1810
    %v1812 = vlaneseq
    %v1813 = vand.u32 %v1812, 127
    %vm1814 = vcmp.eq.s32.totalorder %v1813, 0
    %1816 = vset.pattern.permute.xlu0 0
    %1817 = vperm.xlu0 %1816, %v1532
    %v1818 = vpop.permute.xlu0 %1817
    %v1820 = vsel %vm1814, %v1818, 0.0
    %vm1821 = vcmp.eq.s32.totalorder %v1813, 1
    %1823 = vset.pattern.permute.xlu0 1
    %1824 = vperm.xlu0 %1823, %v1554
    %v1825 = vpop.permute.xlu0 %1824
    %v1827 = vsel %vm1821, %v1825, 0.0
    %v1828 = vadd.f32 %v1820, %v1827
    %vm1829 = vcmp.eq.s32.totalorder %v1813, 2
    %1830 = vset.pattern.permute.xlu0 2
    %1831 = vperm.xlu0 %1830, %v1554
    %v1832 = vpop.permute.xlu0 %1831
    %v1834 = vsel %vm1829, %v1832, 0.0
    %v1835 = vadd.f32 %v1828, %v1834
    %vm1836 = vcmp.eq.s32.totalorder %v1813, 3
    %1838 = vset.pattern.permute.xlu0 0
    %1839 = vperm.xlu0 %1838, %v1811
    %v1840 = vpop.permute.xlu0 %1839
    %v1842 = vsel %vm1836, %v1840, 0.0
    %v1843 = vadd.f32 %v1835, %v1842
    %1844 = vst [vmem:[%s8] sm:$0x3] %v1843
    // Predicated region
    $region30: #{rgbdmh_forward.3} parent=1 // pred_check
      _
    $region31: #{rgbdmh_forward.3} parent=1 // pred_check_branch
      %1846 = sbr.rel (0) target = $region33
    $region32: #{rgbdmh_forward.3} parent=1 // pred_region
      %1848 = vsyncadd [#allocation3], 0
      %s1850 = sshll.u32 [#allocation2], 4
      %s1851 = int_to_ptr.vmem [resolvable:$true] %s1850
      %s1852 = sshll.u32 %s7, 4
      %s1853 = int_to_ptr.hbm [resolvable:$true] %s1852
      %1855 = dma.vmem_to_hbm [thread:$0]  %s1851, 192, %s1853, [#allocation3]
    $region33: #{rgbdmh_forward.3} parent=1 // pred_fallthru
      _
    // Predicated region
    $region34: #{rgbdmh_forward.3} parent=1 // pred_check
      _
    $region35: #{rgbdmh_forward.3} parent=1 // pred_check_branch
      %1857 = sbr.rel (0) target = $region37
    $region36: #{rgbdmh_forward.3} parent=1 // pred_region
      _
    $region37: #{rgbdmh_forward.3} parent=1 // pred_fallthru
      _
    // Predicated region
    $region38: #{rgbdmh_forward.3} parent=1 // pred_check
      _
    $region39: #{rgbdmh_forward.3} parent=1 // pred_check_branch
      %1859 = sbr.rel (0) target = $region41
    $region40: #{rgbdmh_forward.3} parent=1 // pred_region
      %1861 = dma.done [#allocation3], 192
    $region41: #{rgbdmh_forward.3} parent=1 // pred_fallthru
      _
    // Predicated region
    $region42: #{rgbdmh_forward.3} parent=1 // pred_check
      _
    $region43: #{rgbdmh_forward.3} parent=1 // pred_check_branch
      %1863 = sbr.rel (0) target = $region45
    $region44: #{rgbdmh_forward.3} parent=1 // pred_region
      _
    $region45: #{rgbdmh_forward.3} parent=1 // pred_fallthru
      _
    %1864 = vsyncpa [#allocation3], 1

</llo_original>
